<compile_context>
chip_gen: v7x
topology: tpu7x:2x2x1
jax: 0.10.0
libtpu: 0.0.40
codegen_flags: <defaults>
</compile_context>

<pallas_src>
import functools

import jax
import jax.numpy as jnp
from jax.experimental import pallas as pl
from jax.experimental.pallas import tpu as pltpu

HIDDEN1 = 300          # first hidden width (torch spec)
HIDDEN2 = 100          # second hidden width (torch spec)
LEAKY_SLOPE = 0.01     # torch.nn.LeakyReLU default negative_slope


def _round_up(n, m):
    return (n + m - 1) // m * m


def _leaky_relu(x):
    return jnp.where(x > 0, x, LEAKY_SLOPE * x)


def _pad2(a, rows, cols):
    """Zero-pad a 2-D array to (rows, cols)."""
    return jnp.pad(a, ((0, rows - a.shape[0]), (0, cols - a.shape[1])))


def _choose_bm(B, in_dim, block_m_cap):
    """Pick the batch-tile row count.

    Multiple of 8, <= cap (default 1024).  Aims for ~8 grid steps on large
    batches (pipelining / megacore) while keeping tiles >= 256 rows (HBM
    efficiency knee) when the batch allows, and keeps one f32 x tile under
    ~4 MiB so 2-3 pipeline buffers fit comfortably in every generation's VMEM.
    """
    cap = min(max(block_m_cap, 8), 1024)
    vmem_rows = max(256, (4 << 20) // max(4 * in_dim, 1))
    cap = min(cap, _round_up(vmem_rows, 8))
    b8 = _round_up(max(B, 1), 8)
    bm = _round_up(-(-b8 // 8), 8)   # ~8 grid steps
    bm = max(bm, 256)                # but never shrink tiles below 256 rows
    bm = min(bm, cap, b8)            # and never exceed the cap / the batch
    return bm


def mlp_kernel(x_ref, w1_ref, b1_ref, w2_ref, b2_ref, w3_ref, b3_ref, o_ref):
    """Fused 3-layer MLP on one (bm, in_dim) batch tile.

    x arrives unpadded f32 and is cast to the compute dtype in-kernel (VPU work
    hidden under the MXU).  Weights are pre-padded along their 128-lane output
    dims and pre-cast; accumulation is f32 on the MXU, biases are added in f32,
    LeakyReLU runs in f32 (v5e VPU has no bf16) before re-casting for the next
    matmul.  The result is stored bf16 to halve output HBM writeback.
    """
    x = x_ref[...].astype(w1_ref.dtype)
    h1 = jnp.dot(x, w1_ref[...], preferred_element_type=jnp.float32) + b1_ref[...]
    h1 = _leaky_relu(h1).astype(w2_ref.dtype)
    h2 = jnp.dot(h1, w2_ref[...], preferred_element_type=jnp.float32) + b2_ref[...]
    h2 = _leaky_relu(h2).astype(w3_ref.dtype)
    out = jnp.dot(h2, w3_ref[...], preferred_element_type=jnp.float32) + b3_ref[...]
    o_ref[...] = out.astype(o_ref.dtype)


@functools.partial(jax.jit, static_argnames=("block_m", "compute_dtype"))
def bottom_model(x, params, *, block_m=1024, compute_dtype=jnp.bfloat16):
    """Forward pass of BottomModel.

    x: (B, input_dim) float32 (passed to the kernel unpadded / uncast).
    params: dict of w1,b1,w2,b2,w3,b3 with weights stored (in_features, out_features)
            and biases (1, out_features), all float32 and unpadded.
    """
    B, in_dim = x.shape
    d1 = params["w1"].shape[1]          # 300
    d2 = params["w2"].shape[1]          # 100
    out_dim = params["w3"].shape[1]

    # Pad only the feature *output* dims to 128-lane multiples; K dims that see
    # real (unpadded) activations stay exact, K dims fed by zero-padded
    # activations are zero-padded, so the math is bit-identical to unpadded.
    d1_pad = _round_up(d1, 128)         # 300 -> 384
    d2_pad = _round_up(d2, 128)         # 100 -> 128
    out_pad = _round_up(out_dim, 128)

    bm = _choose_bm(B, in_dim, block_m)
    num_steps = pl.cdiv(B, bm)          # final partial block is clipped by Pallas
    grid = (num_steps,)

    # Tiny one-time weight/bias copies (cast + column/row zero-pad); biases stay f32.
    w1 = _pad2(params["w1"].astype(compute_dtype), in_dim, d1_pad)
    w2 = _pad2(params["w2"].astype(compute_dtype), d1_pad, d2_pad)
    w3 = _pad2(params["w3"].astype(compute_dtype), d2_pad, out_pad)
    b1 = _pad2(params["b1"], 1, d1_pad)
    b2 = _pad2(params["b2"], 1, d2_pad)
    b3 = _pad2(params["b3"], 1, out_pad)

    # Deepen the x prefetch pipeline when there are enough grid steps to use it.
    if num_steps >= 3:
        x_spec = pl.BlockSpec((bm, in_dim), lambda i: (i, 0),
                              pipeline_mode=pl.Buffered(3))
    else:
        x_spec = pl.BlockSpec((bm, in_dim), lambda i: (i, 0))

    out_padded = pl.pallas_call(
        mlp_kernel,
        out_shape=jax.ShapeDtypeStruct((B, out_pad), compute_dtype),
        grid_spec=pltpu.PrefetchScalarGridSpec(
            num_scalar_prefetch=0,
            grid=grid,
            in_specs=[
                x_spec,                                             # x batch tile (unpadded)
                pl.BlockSpec((in_dim, d1_pad), lambda i: (0, 0)),   # w1 (VMEM-resident)
                pl.BlockSpec((1, d1_pad), lambda i: (0, 0)),        # b1
                pl.BlockSpec((d1_pad, d2_pad), lambda i: (0, 0)),   # w2 (VMEM-resident)
                pl.BlockSpec((1, d2_pad), lambda i: (0, 0)),        # b2
                pl.BlockSpec((d2_pad, out_pad), lambda i: (0, 0)),  # w3 (VMEM-resident)
                pl.BlockSpec((1, out_pad), lambda i: (0, 0)),       # b3
            ],
            out_specs=pl.BlockSpec((bm, out_pad), lambda i: (i, 0)),
        ),
        compiler_params=pltpu.CompilerParams(
            dimension_semantics=("parallel",),   # batch tiles shard across TCs (v7x)
            vmem_limit_bytes=32 * 1024 * 1024,   # explicit: fits v7x's 64 MiB part
        ),
    )(x, w1, b1, w2, b2, w3, b3)

    # Tiny post-op: drop lane padding and restore the f32 interface dtype.
    return out_padded[:, :out_dim].astype(jnp.float32)


def init_params(key, input_dim, output_dim):
    """Deterministic kaiming-normal-ish init (matches weights_init spirit).

    Weights stored (in_features, out_features); biases (1, out_features).
    """
    ks = jax.random.split(key, 6)

    def linear(kw, kb, fan_in, fan_out):
        w = jax.random.normal(kw, (fan_in, fan_out), jnp.float32) * jnp.sqrt(2.0 / fan_in)
        bound = 1.0 / jnp.sqrt(fan_in)
        b = jax.random.uniform(kb, (1, fan_out), jnp.float32, -bound, bound)
        return w, b

    w1, b1 = linear(ks[0], ks[1], input_dim, HIDDEN1)
    w2, b2 = linear(ks[2], ks[3], HIDDEN1, HIDDEN2)
    w3, b3 = linear(ks[4], ks[5], HIDDEN2, output_dim)
    return dict(w1=w1, b1=b1, w2=w2, b2=b2, w3=w3, b3=b3)


def reference(x, p, compute_dtype=jnp.bfloat16):
    """Pure-JAX reference mirroring the kernel's bf16-compute / f32-accumulate path."""
    cd = compute_dtype
    h = jnp.dot(x.astype(cd), p["w1"].astype(cd), preferred_element_type=jnp.float32) + p["b1"]
    h = jnp.where(h > 0, h, LEAKY_SLOPE * h).astype(cd)
    h = jnp.dot(h, p["w2"].astype(cd), preferred_element_type=jnp.float32) + p["b2"]
    h = jnp.where(h > 0, h, LEAKY_SLOPE * h).astype(cd)
    out = jnp.dot(h, p["w3"].astype(cd), preferred_element_type=jnp.float32) + p["b3"]
    # kernel stores bf16 and re-casts to f32 at the interface; mirror that rounding
    return out.astype(cd).astype(jnp.float32)


if __name__ == "__main__":
    key = jax.random.PRNGKey(0)
    kx, kp = jax.random.split(key)

    batch, input_dim, output_dim = 512, 32, 16
    x = jax.random.normal(kx, (batch, input_dim), jnp.float32)
    params = init_params(kp, input_dim, output_dim)

    out = jax.block_until_ready(bottom_model(x, params))
    ref = reference(x, params)
    assert out.shape == (batch, output_dim), out.shape
    assert jnp.allclose(out, ref, atol=2e-2, rtol=2e-2), "mismatch vs reference"

    # Ragged batch (not a multiple of 8 / bm): exercises the clipped final block
    # now that there is no wrapper-side batch padding.
    x_small = jax.random.normal(kx, (37, input_dim), jnp.float32)
    out_small = jax.block_until_ready(bottom_model(x_small, params))
    ref_small = reference(x_small, params)
    assert out_small.shape == (37, output_dim)
    assert jnp.allclose(out_small, ref_small, atol=2e-2, rtol=2e-2), "ragged mismatch"

    # Larger ragged batch: >=3 grid steps, exercises the Buffered(3) x pipeline
    # together with a clipped last block.
    x_big = jax.random.normal(kx, (1300, input_dim), jnp.float32)
    out_big = jax.block_until_ready(bottom_model(x_big, params))
    ref_big = reference(x_big, params)
    assert out_big.shape == (1300, output_dim)
    assert jnp.allclose(out_big, ref_big, atol=2e-2, rtol=2e-2), "multi-step mismatch"

    print("KERNEL_OK")
</pallas_src>

<mosaic_0001>
module attributes {stable_mosaic.version = 11 : i64} {
  func.func @mlp_kernel(%arg0: i32, %arg1: memref<256x32xf32, #tpu.memory_space<vmem>>, %arg2: memref<32x384xbf16, #tpu.memory_space<vmem>>, %arg3: memref<1x384xf32, #tpu.memory_space<vmem>>, %arg4: memref<384x128xbf16, #tpu.memory_space<vmem>>, %arg5: memref<1x128xf32, #tpu.memory_space<vmem>>, %arg6: memref<128x128xbf16, #tpu.memory_space<vmem>>, %arg7: memref<1x128xf32, #tpu.memory_space<vmem>>, %arg8: memref<256x128xbf16, #tpu.memory_space<vmem>>) attributes {dimension_semantics = [#tpu.dimension_semantics<parallel>], iteration_bounds = array<i64: 2>, scalar_prefetch = 0 : i64, scratch_operands = 0 : i64, tpu.core_type = #tpu.core_type<tc>, window_params = [{transform_indices = @transform_0, window_bounds = array<i64: 256, 32>}, {pipeline_mode = #tpu.pipeline_mode<synchronous>, transform_indices = @transform_1, window_bounds = array<i64: 32, 384>}, {pipeline_mode = #tpu.pipeline_mode<synchronous>, transform_indices = @transform_2, window_bounds = array<i64: 1, 384>}, {pipeline_mode = #tpu.pipeline_mode<synchronous>, transform_indices = @transform_3, window_bounds = array<i64: 384, 128>}, {pipeline_mode = #tpu.pipeline_mode<synchronous>, transform_indices = @transform_4, window_bounds = array<i64: 1, 128>}, {pipeline_mode = #tpu.pipeline_mode<synchronous>, transform_indices = @transform_5, window_bounds = array<i64: 128, 128>}, {pipeline_mode = #tpu.pipeline_mode<synchronous>, transform_indices = @transform_6, window_bounds = array<i64: 1, 128>}, {transform_indices = @transform_7, window_bounds = array<i64: 256, 128>}]} {
    %c0 = arith.constant 0 : index
    %c0_0 = arith.constant 0 : index
    %0 = vector.load %arg1[%c0, %c0_0] : memref<256x32xf32, #tpu.memory_space<vmem>>, vector<256x32xf32>
    %1 = arith.truncf %0 : vector<256x32xf32> to vector<256x32xbf16>
    %c0_1 = arith.constant 0 : index
    %c0_2 = arith.constant 0 : index
    %2 = vector.load %arg2[%c0_1, %c0_2] : memref<32x384xbf16, #tpu.memory_space<vmem>>, vector<32x384xbf16>
    %cst = arith.constant dense<0.000000e+00> : vector<256x384xf32>
    %3 = tpu.matmul %1, %2, %cst {dimension_numbers = #tpu.dot_dimension_numbers<[1], [0], [0], [1], [0, 0, 1, 1], [], []>} : vector<256x32xbf16>, vector<32x384xbf16>, vector<256x384xf32> -> vector<256x384xf32>
    %c0_3 = arith.constant 0 : index
    %c0_4 = arith.constant 0 : index
    %4 = vector.load %arg3[%c0_3, %c0_4] : memref<1x384xf32, #tpu.memory_space<vmem>>, vector<1x384xf32>
    %5 = vector.broadcast %4 : vector<1x384xf32> to vector<256x384xf32>
    %6 = arith.addf %3, %5 : vector<256x384xf32>
    %cst_5 = arith.constant 0.000000e+00 : f32
    %7 = vector.broadcast %cst_5 : f32 to vector<256x384xf32>
    %8 = arith.cmpf ogt, %6, %7 : vector<256x384xf32>
    %cst_6 = arith.constant 0.00999999977 : f32
    %9 = vector.broadcast %cst_6 : f32 to vector<256x384xf32>
    %10 = arith.mulf %9, %6 : vector<256x384xf32>
    %11 = arith.select %8, %6, %10 : vector<256x384xi1>, vector<256x384xf32>
    %12 = arith.truncf %11 : vector<256x384xf32> to vector<256x384xbf16>
    %c0_7 = arith.constant 0 : index
    %c0_8 = arith.constant 0 : index
    %13 = vector.load %arg4[%c0_7, %c0_8] : memref<384x128xbf16, #tpu.memory_space<vmem>>, vector<384x128xbf16>
    %cst_9 = arith.constant dense<0.000000e+00> : vector<256x128xf32>
    %14 = tpu.matmul %12, %13, %cst_9 {dimension_numbers = #tpu.dot_dimension_numbers<[1], [0], [0], [1], [0, 0, 1, 1], [], []>} : vector<256x384xbf16>, vector<384x128xbf16>, vector<256x128xf32> -> vector<256x128xf32>
    %c0_10 = arith.constant 0 : index
    %c0_11 = arith.constant 0 : index
    %15 = vector.load %arg5[%c0_10, %c0_11] : memref<1x128xf32, #tpu.memory_space<vmem>>, vector<1x128xf32>
    %16 = vector.broadcast %15 : vector<1x128xf32> to vector<256x128xf32>
    %17 = arith.addf %14, %16 : vector<256x128xf32>
    %cst_12 = arith.constant 0.000000e+00 : f32
    %18 = vector.broadcast %cst_12 : f32 to vector<256x128xf32>
    %19 = arith.cmpf ogt, %17, %18 : vector<256x128xf32>
    %cst_13 = arith.constant 0.00999999977 : f32
    %20 = vector.broadcast %cst_13 : f32 to vector<256x128xf32>
    %21 = arith.mulf %20, %17 : vector<256x128xf32>
    %22 = arith.select %19, %17, %21 : vector<256x128xi1>, vector<256x128xf32>
    %23 = arith.truncf %22 : vector<256x128xf32> to vector<256x128xbf16>
    %c0_14 = arith.constant 0 : index
    %c0_15 = arith.constant 0 : index
    %24 = vector.load %arg6[%c0_14, %c0_15] : memref<128x128xbf16, #tpu.memory_space<vmem>>, vector<128x128xbf16>
    %cst_16 = arith.constant dense<0.000000e+00> : vector<256x128xf32>
    %25 = tpu.matmul %23, %24, %cst_16 {dimension_numbers = #tpu.dot_dimension_numbers<[1], [0], [0], [1], [0, 0, 1, 1], [], []>} : vector<256x128xbf16>, vector<128x128xbf16>, vector<256x128xf32> -> vector<256x128xf32>
    %c0_17 = arith.constant 0 : index
    %c0_18 = arith.constant 0 : index
    %26 = vector.load %arg7[%c0_17, %c0_18] : memref<1x128xf32, #tpu.memory_space<vmem>>, vector<1x128xf32>
    %27 = vector.broadcast %26 : vector<1x128xf32> to vector<256x128xf32>
    %28 = arith.addf %25, %27 : vector<256x128xf32>
    %29 = arith.truncf %28 : vector<256x128xf32> to vector<256x128xbf16>
    %c0_19 = arith.constant 0 : index
    %c0_20 = arith.constant 0 : index
    %30 = vector.load %arg8[%c0_19, %c0_20] : memref<256x128xbf16, #tpu.memory_space<vmem>>, vector<256x128xbf16>
    tpu.vector_store %arg8[%c0_19, %c0_20], %29 {strides = array<i32>} : memref<256x128xbf16, #tpu.memory_space<vmem>>, vector<256x128xbf16>,
    return
  }
  func.func @transform_0(%arg0: i32) -> (i32, i32) {
    %c0_i32 = arith.constant 0 : i32
    %c0_i32_0 = arith.constant 0 : i32
    return %arg0, %c0_i32 : i32, i32
  }
  func.func @transform_1(%arg0: i32) -> (i32, i32) {
    %c0_i32 = arith.constant 0 : i32
    %c0_i32_0 = arith.constant 0 : i32
    %c0_i32_1 = arith.constant 0 : i32
    return %c0_i32, %c0_i32_0 : i32, i32
  }
  func.func @transform_2(%arg0: i32) -> (i32, i32) {
    %c0_i32 = arith.constant 0 : i32
    %c0_i32_0 = arith.constant 0 : i32
    %c0_i32_1 = arith.constant 0 : i32
    return %c0_i32, %c0_i32_0 : i32, i32
  }
  func.func @transform_3(%arg0: i32) -> (i32, i32) {
    %c0_i32 = arith.constant 0 : i32
    %c0_i32_0 = arith.constant 0 : i32
    %c0_i32_1 = arith.constant 0 : i32
    return %c0_i32, %c0_i32_0 : i32, i32
  }
  func.func @transform_4(%arg0: i32) -> (i32, i32) {
    %c0_i32 = arith.constant 0 : i32
    %c0_i32_0 = arith.constant 0 : i32
    %c0_i32_1 = arith.constant 0 : i32
    return %c0_i32, %c0_i32_0 : i32, i32
  }
  func.func @transform_5(%arg0: i32) -> (i32, i32) {
    %c0_i32 = arith.constant 0 : i32
    %c0_i32_0 = arith.constant 0 : i32
    %c0_i32_1 = arith.constant 0 : i32
    return %c0_i32, %c0_i32_0 : i32, i32
  }
  func.func @transform_6(%arg0: i32) -> (i32, i32) {
    %c0_i32 = arith.constant 0 : i32
    %c0_i32_0 = arith.constant 0 : i32
    %c0_i32_1 = arith.constant 0 : i32
    return %c0_i32, %c0_i32_0 : i32, i32
  }
  func.func @transform_7(%arg0: i32) -> (i32, i32) {
    %c0_i32 = arith.constant 0 : i32
    %c0_i32_0 = arith.constant 0 : i32
    return %arg0, %c0_i32 : i32, i32
  }
}

</mosaic_0001>

<llo_original>
// kernel: bottom_model.1
$region0: #{bottom_model.1}
  #allocation0 [shape = 'u32[]', space=smem, size = 0x4, offset = 0x4, fixed_abs, tag = 'smem constant byte address 0x4 - core index']
  #allocation1 [shape = 'u32[144,128]{1,0:T(1,128)}', space=vmem, size = 0x12000, scoped, tag = 'internal scratch']
  %s0 = inlined_call_operand.vmem [shape: f32[512,32], index: 0, kind: input, shape index: {}]
  %s1 = inlined_call_operand.vmem [shape: bf16[32,384], index: 1, kind: input, shape index: {}]
  %s2 = inlined_call_operand.vmem [shape: f32[1,384], index: 2, kind: input, shape index: {}]
  %s3 = inlined_call_operand.vmem [shape: bf16[384,128], index: 3, kind: input, shape index: {}]
  %s4 = inlined_call_operand.vmem [shape: f32[1,128], index: 4, kind: input, shape index: {}]
  %s5 = inlined_call_operand.vmem [shape: bf16[128,128], index: 5, kind: input, shape index: {}]
  %s6 = inlined_call_operand.vmem [shape: f32[1,128], index: 6, kind: input, shape index: {}]
  %s7 = inlined_call_operand.vmem [shape: bf16[512,128], index: 7, kind: output, shape index: {}]
  %s8 = sld [smem:[#allocation0]]
  $region61: #{bottom_model.1} parent=0
    _
  %s10 = ssub.s32 1, %s8
  %s11 = scalar_select 0, %s10, %s8
  loop: start=0, step=1, limit=4
  $region2: #{bottom_model.1} parent=0 // loop_pre_header
    _
  $region3: #{bottom_model.1} parent=0 // loop_header
    %s13 = sphi 0, %s17
    %p14 = scmp.ge.s32.totalorder %s13, 4
    %s23 = sphi 0, %s25
    %s26 = sphi 0, %s23
    %s27 = sphi 0, %s26
    %s43 = sphi 0, %s27
    %s47 = sphi 0, %s47
    %s49 = sphi 0, %s47
    %s50 = sphi 0, %s49
    %s64 = sphi 0, %s50
    %s68 = sphi 0, %s68
    %s70 = sphi 0, %s68
    %s71 = sphi 0, %s70
    %s85 = sphi 0, %s71
    %s89 = sphi 0, %s89
    %s91 = sphi 0, %s89
    %s92 = sphi 0, %s91
    %s106 = sphi 0, %s92
    %s110 = sphi 0, %s110
    %s112 = sphi 0, %s110
    %s113 = sphi 0, %s112
    %s127 = sphi 0, %s113
    %s131 = sphi 0, %s131
    %s133 = sphi 0, %s131
    %s134 = sphi 0, %s133
    %s148 = sphi 0, %s134
    %s152 = sphi 0, %s152
    %s154 = sphi 0, %s152
    %s155 = sphi 0, %s154
    %s169 = sphi 0, %s155
    %s175 = sphi 0, %s177
    %s178 = sphi 0, %s175
    %s179 = sphi 0, %s178
    %s195 = sphi 0, %s179
  $region4: #{bottom_model.1} parent=0 // loop_header_branch
    %16 = sbr.rel (%p14) target = $region8
  $region5: #{bottom_model.1} parent=0 // loop_body
    %s18 = ssub.s32 %s13, 1
    %s19 = ssub.s32 %s13, 2
    %s20 = sadd.s32 %s13, 1
    %s21 = ssub.s32 %s13, %s20
    %p22 = scmp.eq.s32.totalorder %s21, 0
    %s24 = sadd.s32 %s23, 1
    %s25 = scalar_select %p22, %s23, %s24
    %p28 = pneg %p22
    %p29 = scmp.eq.s32.totalorder %s13, 1
    %p30 = por %p28, %p29
    %p31 = scmp.ne.s32.totalorder %s23, %s26
    %p32 = scmp.eq.s32.totalorder %s13, 0
    %p33 = por %p31, %p32
    %p34 = scmp.ne.s32.totalorder %s23, %s26
    %p35 = scmp.eq.s32.totalorder %s18, 1
    %p36 = por %p34, %p35
    %p37 = scmp.ne.s32.totalorder %s26, %s27
    %p38 = scmp.eq.s32.totalorder %s18, 0
    %p39 = por %p37, %p38
    %p40 = scmp.ne.s32.totalorder %s26, %s27
    %p41 = scmp.eq.s32.totalorder %s19, 1
    %p42 = por %p40, %p41
    %p44 = scmp.ne.s32.totalorder %s27, %s43
    %p45 = scmp.eq.s32.totalorder %s19, 0
    %p46 = por %p44, %p45
    %s48 = sadd.s32 %s47, 1
    %p51 = scmp.eq.s32.totalorder %s13, 1
    %p52 = scmp.ne.s32.totalorder %s47, %s49
    %p53 = scmp.eq.s32.totalorder %s13, 0
    %p54 = por %p52, %p53
    %p55 = scmp.ne.s32.totalorder %s47, %s49
    %p56 = scmp.eq.s32.totalorder %s18, 1
    %p57 = por %p55, %p56
    %p58 = scmp.ne.s32.totalorder %s49, %s50
    %p59 = scmp.eq.s32.totalorder %s18, 0
    %p60 = por %p58, %p59
    %p61 = scmp.ne.s32.totalorder %s49, %s50
    %p62 = scmp.eq.s32.totalorder %s19, 1
    %p63 = por %p61, %p62
    %p65 = scmp.ne.s32.totalorder %s50, %s64
    %p66 = scmp.eq.s32.totalorder %s19, 0
    %p67 = por %p65, %p66
    %s69 = sadd.s32 %s68, 1
    %p72 = scmp.eq.s32.totalorder %s13, 1
    %p73 = scmp.ne.s32.totalorder %s68, %s70
    %p74 = scmp.eq.s32.totalorder %s13, 0
    %p75 = por %p73, %p74
    %p76 = scmp.ne.s32.totalorder %s68, %s70
    %p77 = scmp.eq.s32.totalorder %s18, 1
    %p78 = por %p76, %p77
    %p79 = scmp.ne.s32.totalorder %s70, %s71
    %p80 = scmp.eq.s32.totalorder %s18, 0
    %p81 = por %p79, %p80
    %p82 = scmp.ne.s32.totalorder %s70, %s71
    %p83 = scmp.eq.s32.totalorder %s19, 1
    %p84 = por %p82, %p83
    %p86 = scmp.ne.s32.totalorder %s71, %s85
    %p87 = scmp.eq.s32.totalorder %s19, 0
    %p88 = por %p86, %p87
    %s90 = sadd.s32 %s89, 1
    %p93 = scmp.eq.s32.totalorder %s13, 1
    %p94 = scmp.ne.s32.totalorder %s89, %s91
    %p95 = scmp.eq.s32.totalorder %s13, 0
    %p96 = por %p94, %p95
    %p97 = scmp.ne.s32.totalorder %s89, %s91
    %p98 = scmp.eq.s32.totalorder %s18, 1
    %p99 = por %p97, %p98
    %p100 = scmp.ne.s32.totalorder %s91, %s92
    %p101 = scmp.eq.s32.totalorder %s18, 0
    %p102 = por %p100, %p101
    %p103 = scmp.ne.s32.totalorder %s91, %s92
    %p104 = scmp.eq.s32.totalorder %s19, 1
    %p105 = por %p103, %p104
    %p107 = scmp.ne.s32.totalorder %s92, %s106
    %p108 = scmp.eq.s32.totalorder %s19, 0
    %p109 = por %p107, %p108
    %s111 = sadd.s32 %s110, 1
    %p114 = scmp.eq.s32.totalorder %s13, 1
    %p115 = scmp.ne.s32.totalorder %s110, %s112
    %p116 = scmp.eq.s32.totalorder %s13, 0
    %p117 = por %p115, %p116
    %p118 = scmp.ne.s32.totalorder %s110, %s112
    %p119 = scmp.eq.s32.totalorder %s18, 1
    %p120 = por %p118, %p119
    %p121 = scmp.ne.s32.totalorder %s112, %s113
    %p122 = scmp.eq.s32.totalorder %s18, 0
    %p123 = por %p121, %p122
    %p124 = scmp.ne.s32.totalorder %s112, %s113
    %p125 = scmp.eq.s32.totalorder %s19, 1
    %p126 = por %p124, %p125
    %p128 = scmp.ne.s32.totalorder %s113, %s127
    %p129 = scmp.eq.s32.totalorder %s19, 0
    %p130 = por %p128, %p129
    %s132 = sadd.s32 %s131, 1
    %p135 = scmp.eq.s32.totalorder %s13, 1
    %p136 = scmp.ne.s32.totalorder %s131, %s133
    %p137 = scmp.eq.s32.totalorder %s13, 0
    %p138 = por %p136, %p137
    %p139 = scmp.ne.s32.totalorder %s131, %s133
    %p140 = scmp.eq.s32.totalorder %s18, 1
    %p141 = por %p139, %p140
    %p142 = scmp.ne.s32.totalorder %s133, %s134
    %p143 = scmp.eq.s32.totalorder %s18, 0
    %p144 = por %p142, %p143
    %p145 = scmp.ne.s32.totalorder %s133, %s134
    %p146 = scmp.eq.s32.totalorder %s19, 1
    %p147 = por %p145, %p146
    %p149 = scmp.ne.s32.totalorder %s134, %s148
    %p150 = scmp.eq.s32.totalorder %s19, 0
    %p151 = por %p149, %p150
    %s153 = sadd.s32 %s152, 1
    %p156 = scmp.eq.s32.totalorder %s13, 1
    %p157 = scmp.ne.s32.totalorder %s152, %s154
    %p158 = scmp.eq.s32.totalorder %s13, 0
    %p159 = por %p157, %p158
    %p160 = scmp.ne.s32.totalorder %s152, %s154
    %p161 = scmp.eq.s32.totalorder %s18, 1
    %p162 = por %p160, %p161
    %p163 = scmp.ne.s32.totalorder %s154, %s155
    %p164 = scmp.eq.s32.totalorder %s18, 0
    %p165 = por %p163, %p164
    %p166 = scmp.ne.s32.totalorder %s154, %s155
    %p167 = scmp.eq.s32.totalorder %s19, 1
    %p168 = por %p166, %p167
    %p170 = scmp.ne.s32.totalorder %s155, %s169
    %p171 = scmp.eq.s32.totalorder %s19, 0
    %p172 = por %p170, %p171
    %s173 = ssub.s32 %s13, %s20
    %p174 = scmp.eq.s32.totalorder %s173, 0
    %s176 = sadd.s32 %s175, 1
    %s177 = scalar_select %p174, %s175, %s176
    %p180 = pneg %p174
    %p181 = scmp.eq.s32.totalorder %s13, 1
    %p182 = por %p180, %p181
    %p183 = scmp.ne.s32.totalorder %s175, %s178
    %p184 = scmp.eq.s32.totalorder %s13, 0
    %p185 = por %p183, %p184
    %p186 = scmp.ne.s32.totalorder %s175, %s178
    %p187 = scmp.eq.s32.totalorder %s18, 1
    %p188 = por %p186, %p187
    %p189 = scmp.ne.s32.totalorder %s178, %s179
    %p190 = scmp.eq.s32.totalorder %s18, 0
    %p191 = por %p189, %p190
    %p192 = scmp.ne.s32.totalorder %s178, %s179
    %p193 = scmp.eq.s32.totalorder %s19, 1
    %p194 = por %p192, %p193
    %p196 = scmp.ne.s32.totalorder %s179, %s195
    %p197 = scmp.eq.s32.totalorder %s19, 0
    %p198 = por %p196, %p197
    %p199 = scmp.le.s32.totalorder 1, %s13
    %p200 = scmp.lt.s32.totalorder %s13, 3
    %p201 = pnand %p199, %p200
    %p202 = pneg %p201
    // Predicated region
    $region9: #{bottom_model.1} parent=5 // pred_check
      _
    $region10: #{bottom_model.1} parent=5 // pred_check_branch
      %204 = sbr.rel (%p201) target = $region12
    $region11: #{bottom_model.1} parent=5 // pred_region
      %s205 = ssub.s32 %s13, 1
      // Predicated region
      $region13: #{bottom_model.1} parent=11 // pred_check
        %p206 = pneg %p60
      $region14: #{bottom_model.1} parent=11 // pred_check_branch
        %208 = sbr.rel (%p206) target = $region16
      $region15: #{bottom_model.1} parent=11 // pred_region
        _
      $region16: #{bottom_model.1} parent=11 // pred_fallthru
        _
      // Predicated region
      $region17: #{bottom_model.1} parent=11 // pred_check
        %p209 = pneg %p81
      $region18: #{bottom_model.1} parent=11 // pred_check_branch
        %211 = sbr.rel (%p209) target = $region20
      $region19: #{bottom_model.1} parent=11 // pred_region
        _
      $region20: #{bottom_model.1} parent=11 // pred_fallthru
        _
      // Predicated region
      $region21: #{bottom_model.1} parent=11 // pred_check
        %p212 = pneg %p102
      $region22: #{bottom_model.1} parent=11 // pred_check_branch
        %214 = sbr.rel (%p212) target = $region24
      $region23: #{bottom_model.1} parent=11 // pred_region
        _
      $region24: #{bottom_model.1} parent=11 // pred_fallthru
        _
      // Predicated region
      $region25: #{bottom_model.1} parent=11 // pred_check
        %p215 = pneg %p123
      $region26: #{bottom_model.1} parent=11 // pred_check_branch
        %217 = sbr.rel (%p215) target = $region28
      $region27: #{bottom_model.1} parent=11 // pred_region
        _
      $region28: #{bottom_model.1} parent=11 // pred_fallthru
        _
      // Predicated region
      $region29: #{bottom_model.1} parent=11 // pred_check
        %p218 = pneg %p144
      $region30: #{bottom_model.1} parent=11 // pred_check_branch
        %220 = sbr.rel (%p218) target = $region32
      $region31: #{bottom_model.1} parent=11 // pred_region
        _
      $region32: #{bottom_model.1} parent=11 // pred_fallthru
        _
      // Predicated region
      $region33: #{bottom_model.1} parent=11 // pred_check
        %p221 = pneg %p165
      $region34: #{bottom_model.1} parent=11 // pred_check_branch
        %223 = sbr.rel (%p221) target = $region36
      $region35: #{bottom_model.1} parent=11 // pred_region
        _
      $region36: #{bottom_model.1} parent=11 // pred_fallthru
        _
    $region12: #{bottom_model.1} parent=5 // pred_fallthru
      _
    %p224 = scmp.lt.s32.totalorder %s13, 2
    // Predicated region
    $region37: #{bottom_model.1} parent=5 // pred_check
      %p225 = pneg %p224
    $region38: #{bottom_model.1} parent=5 // pred_check_branch
      %227 = sbr.rel (%p225) target = $region40
    $region39: #{bottom_model.1} parent=5 // pred_region
      // Predicated region
      $region41: #{bottom_model.1} parent=39 // pred_check
        %p228 = pneg %p33
      $region42: #{bottom_model.1} parent=39 // pred_check_branch
        %230 = sbr.rel (%p228) target = $region44
      $region43: #{bottom_model.1} parent=39 // pred_region
        %s231 = smul.u32 32, %s13
        %p232 = scmp.lt.s32.totalorder %s231, 63
        %s233 = scalar_select %p232, %s231, 63
        %s234 = smul.addr %s233, 8
        %s235 = scalar_lea.vmem %s0, %s234
        %s236 = smul.u32 32, %s13
      $region44: #{bottom_model.1} parent=39 // pred_fallthru
        _
    $region40: #{bottom_model.1} parent=5 // pred_fallthru
      _
    %p237 = scmp.le.s32.totalorder 1, %s13
    %p238 = scmp.lt.s32.totalorder %s13, 3
    %p239 = pnand %p237, %p238
    %p240 = pneg %p239
    // Predicated region
    $region45: #{bottom_model.1} parent=5 // pred_check
      _
    $region46: #{bottom_model.1} parent=5 // pred_check_branch
      %242 = sbr.rel (%p239) target = $region48
    $region47: #{bottom_model.1} parent=5 // pred_region
      %s243 = ssub.s32 %s13, 1
      %s244 = smul.u32 32, %s18
      %p245 = scmp.lt.s32.totalorder %s244, 63
      %s246 = scalar_select %p245, %s244, 63
      %s247 = smul.addr %s246, 8
      %s248 = scalar_lea.vmem %s0, %s247
      %p249 = pneg %p39
      %p250 = pneg %p36
      %p251 = pneg %p60
      %p252 = pneg %p57
      %p253 = pneg %p81
      %p254 = pneg %p78
      %p255 = pneg %p102
      %p256 = pneg %p99
      %p257 = pneg %p123
      %p258 = pneg %p120
      %p259 = pneg %p144
      %p260 = pneg %p141
      %p261 = pneg %p165
      %p262 = pneg %p162
      %p263 = pneg %p191
      %p264 = pneg %p188
      %s265 = smul.u32 32, %s18
      %p266 = scmp.lt.s32.totalorder %s265, 63
      %s267 = scalar_select %p266, %s265, 63
      %s268 = smul.addr %s267, 4
      %s269 = scalar_lea.vmem %s7, %s268
      %s270 = smul.u32 32, %s18
      %p271 = scmp.lt.s32.totalorder %s270, 63
      %s272 = scalar_select %p271, %s270, 63
      %s273 = smul.addr %s272, 8
      %s274 = scalar_lea.vmem %s0, %s273
      %s275 = smul.u32 32, %s18
      %s276 = smul.u32 32, %s18
      %p277 = scmp.lt.s32.totalorder %s276, 63
      %s278 = scalar_select %p277, %s276, 63
      %s279 = smul.addr %s278, 4
      %s280 = scalar_lea.vmem %s7, %s279
      %s281 = smul.u32 32, %s18
      %v283 = vld [vmem:[%s274] sm:$0xff]
      %v284 = vld [vmem:[%s274 + $0x8] sm:$0xff]
      %v285 = vld [vmem:[%s274 + $0x10] sm:$0xff]
      %v286 = vld [vmem:[%s274 + $0x18] sm:$0xff]
      %v287 = vld [vmem:[%s274 + $0x20] sm:$0xff]
      %v288 = vld [vmem:[%s274 + $0x28] sm:$0xff]
      %v289 = vld [vmem:[%s274 + $0x30] sm:$0xff]
      %v290 = vld [vmem:[%s274 + $0x38] sm:$0xff]
      %v291 = vld [vmem:[%s274 + $0x40] sm:$0xff]
      %v292 = vld [vmem:[%s274 + $0x48] sm:$0xff]
      %v293 = vld [vmem:[%s274 + $0x50] sm:$0xff]
      %v294 = vld [vmem:[%s274 + $0x58] sm:$0xff]
      %v295 = vld [vmem:[%s274 + $0x60] sm:$0xff]
      %v296 = vld [vmem:[%s274 + $0x68] sm:$0xff]
      %v297 = vld [vmem:[%s274 + $0x70] sm:$0xff]
      %v298 = vld [vmem:[%s274 + $0x78] sm:$0xff]
      %v299 = vld [vmem:[%s274 + $0x80] sm:$0xff]
      %v300 = vld [vmem:[%s274 + $0x88] sm:$0xff]
      %v301 = vld [vmem:[%s274 + $0x90] sm:$0xff]
      %v302 = vld [vmem:[%s274 + $0x98] sm:$0xff]
      %v303 = vld [vmem:[%s274 + $0xa0] sm:$0xff]
      %v304 = vld [vmem:[%s274 + $0xa8] sm:$0xff]
      %v305 = vld [vmem:[%s274 + $0xb0] sm:$0xff]
      %v306 = vld [vmem:[%s274 + $0xb8] sm:$0xff]
      %v307 = vld [vmem:[%s274 + $0xc0] sm:$0xff]
      %v308 = vld [vmem:[%s274 + $0xc8] sm:$0xff]
      %v309 = vld [vmem:[%s274 + $0xd0] sm:$0xff]
      %v310 = vld [vmem:[%s274 + $0xd8] sm:$0xff]
      %v311 = vld [vmem:[%s274 + $0xe0] sm:$0xff]
      %v312 = vld [vmem:[%s274 + $0xe8] sm:$0xff]
      %v313 = vld [vmem:[%s274 + $0xf0] sm:$0xff]
      %v314 = vld [vmem:[%s274 + $0xf8] sm:$0xff]
      %v315 = vpack.c.bf16 %v284, %v283
      %v316 = vpack.c.bf16 %v286, %v285
      %v317 = vpack.c.bf16 %v288, %v287
      %v318 = vpack.c.bf16 %v290, %v289
      %v319 = vpack.c.bf16 %v292, %v291
      %v320 = vpack.c.bf16 %v294, %v293
      %v321 = vpack.c.bf16 %v296, %v295
      %v322 = vpack.c.bf16 %v298, %v297
      %v323 = vpack.c.bf16 %v300, %v299
      %v324 = vpack.c.bf16 %v302, %v301
      %v325 = vpack.c.bf16 %v304, %v303
      %v326 = vpack.c.bf16 %v306, %v305
      %v327 = vpack.c.bf16 %v308, %v307
      %v328 = vpack.c.bf16 %v310, %v309
      %v329 = vpack.c.bf16 %v312, %v311
      %v330 = vpack.c.bf16 %v314, %v313
      %v331 = vld [vmem:[%s1] sm:$0xff]
      %v332 = vld [vmem:[%s1 + $0x8] sm:$0xf]
      %v333 = vld [vmem:[%s1 + $0xc] sm:$0xff]
      %v334 = vld [vmem:[%s1 + $0x14] sm:$0xf]
      %v335 = vld [vmem:[%s1 + $0x18] sm:$0xff]
      %v336 = vld [vmem:[%s1 + $0x20] sm:$0xf]
      %v337 = vld [vmem:[%s1 + $0x24] sm:$0xff]
      %v338 = vld [vmem:[%s1 + $0x2c] sm:$0xf]
      %v339 = vld [vmem:[%s2] sm:$0x7]
      %v341 = vlaneseq
      %v342 = vshrl.u32 %v341, 7
      %v343 = vsub.s32 0, %v342
      %v344 = vrot.slane %v339, %v343
      %v345 = vlaneseq
      %v346 = vshrl.u32 %v345, 7
      %v347 = vsub.s32 1, %v346
      %v348 = vrot.slane %v339, %v347
      %v349 = vlaneseq
      %v350 = vshrl.u32 %v349, 7
      %v351 = vsub.s32 2, %v350
      %v352 = vrot.slane %v339, %v351
      %v364 = vunpack.c.l.b16 %v331
      %v365 = vunpack.c.h.b16 %v331
      %v366 = vunpack.c.l.b16 %v332
      %v367 = vunpack.c.l.b16 %v333
      %v368 = vunpack.c.h.b16 %v333
      %v369 = vunpack.c.l.b16 %v334
      %v370 = vunpack.c.l.b16 %v335
      %v371 = vunpack.c.h.b16 %v335
      %v372 = vunpack.c.l.b16 %v336
      %v373 = vunpack.c.l.b16 %v337
      %v374 = vunpack.c.h.b16 %v337
      %v375 = vunpack.c.l.b16 %v338
      %v376 = vpack.c.b16 %v367, %v364
      %v377 = vpack.c.b16 %v368, %v365
      %v378 = vpack.c.b16 %v369, %v366
      %v379 = vpack.c.b16 %v373, %v370
      %v380 = vpack.c.b16 %v374, %v371
      %v381 = vpack.c.b16 %v375, %v372
      %vm388 = vcmask 261120
      %v390 = vsel %vm388, %v315, 0
      %v393 = vsel %vm388, %v316, 0
      %v396 = vsel %vm388, %v317, 0
      %v399 = vsel %vm388, %v318, 0
      %v402 = vsel %vm388, %v319, 0
      %v405 = vsel %vm388, %v320, 0
      %v408 = vsel %vm388, %v321, 0
      %v411 = vsel %vm388, %v322, 0
      %v414 = vsel %vm388, %v323, 0
      %v417 = vsel %vm388, %v324, 0
      %v420 = vsel %vm388, %v325, 0
      %v423 = vsel %vm388, %v326, 0
      %v426 = vsel %vm388, %v327, 0
      %v429 = vsel %vm388, %v328, 0
      %v432 = vsel %vm388, %v329, 0
      %v435 = vsel %vm388, %v330, 0
      %437 = vmatprep.subr.bf16.mxu0 %v377
      %438 = vmatpush1.bf16.msra.mxu0 %v376
      %439 = vmatprep.subr.bf16.mxu0 %v380
      %440 = vmatpush1.bf16.msra.mxu0 %v379
      %441 = vmatprep.subr.bf16.mxu0 0
      %442 = vmatpush1.bf16.msra.mxu0 0
      %443 = vmatprep.subr.bf16.mxu0 0
      %444 = vmatpush1.bf16.msra.mxu0 0
      %445 = vmatprep.subr.bf16.mxu0 0
      %446 = vmatpush1.bf16.msra.mxu0 0
      %447 = vmatprep.subr.bf16.mxu0 0
      %448 = vmatpush1.bf16.msra.mxu0 0
      %449 = vmatprep.subr.bf16.mxu0 0
      %450 = vmatpush1.bf16.msra.mxu0 0
      %451 = vmatprep.subr.bf16.mxu0 0
      %452 = vmatpush1.bf16.msra.mxu0 0
      %453 = vmatprep.subr.bf16.mxu0 0
      %454 = vmatpush1.bf16.msra.mxu0 0
      %455 = vmatprep.subr.bf16.mxu0 0
      %456 = vmatpush1.bf16.msra.mxu0 0
      %457 = vmatprep.subr.bf16.mxu0 0
      %458 = vmatpush1.bf16.msra.mxu0 0
      %459 = vmatprep.subr.bf16.mxu0 0
      %460 = vmatpush1.bf16.msra.mxu0 0
      %461 = vmatprep.subr.bf16.mxu0 0
      %462 = vmatpush1.bf16.msra.mxu0 0
      %463 = vmatprep.subr.bf16.mxu0 0
      %464 = vmatpush1.bf16.msra.mxu0 0
      %465 = vmatprep.subr.bf16.mxu0 0
      %466 = vmatpush1.bf16.msra.mxu0 0
      %467 = vmatprep.subr.bf16.mxu0 0
      %468 = vmatpush1.bf16.msra.mxu0 0
      %469 = vmatprep.mubr.bf16.mxu0 0
      %470 = vmatmul.mubr.bf16.gmra.mrb[0].mxu0 %v390
      %v471 = vpop.f32.mrb[0].mxu0
      %v472 = vadd.f32 %v344, %v471
      %v473 = vpop.f32.mrb[0].mxu0
      %v474 = vadd.f32 %v348, %v473
      %v475 = vpop.f32.mrb[0].mxu0
      %v476 = vadd.f32 %v344, %v475
      %v477 = vpop.f32.mrb[0].mxu0
      %v478 = vadd.f32 %v348, %v477
      %479 = vmatprep.mubr.bf16.mxu0 0
      %480 = vmatmul.mubr.bf16.gmra.mrb[0].mxu0 %v393
      %v481 = vpop.f32.mrb[0].mxu0
      %v482 = vadd.f32 %v344, %v481
      %v483 = vpop.f32.mrb[0].mxu0
      %v484 = vadd.f32 %v348, %v483
      %v485 = vpop.f32.mrb[0].mxu0
      %v486 = vadd.f32 %v344, %v485
      %v487 = vpop.f32.mrb[0].mxu0
      %v488 = vadd.f32 %v348, %v487
      %489 = vmatprep.mubr.bf16.mxu0 0
      %490 = vmatmul.mubr.bf16.gmra.mrb[0].mxu0 %v396
      %v491 = vpop.f32.mrb[0].mxu0
      %v492 = vadd.f32 %v344, %v491
      %v493 = vpop.f32.mrb[0].mxu0
      %v494 = vadd.f32 %v348, %v493
      %v495 = vpop.f32.mrb[0].mxu0
      %v496 = vadd.f32 %v344, %v495
      %v497 = vpop.f32.mrb[0].mxu0
      %v498 = vadd.f32 %v348, %v497
      %499 = vmatprep.mubr.bf16.mxu0 0
      %500 = vmatmul.mubr.bf16.gmra.mrb[0].mxu0 %v399
      %v501 = vpop.f32.mrb[0].mxu0
      %v502 = vadd.f32 %v344, %v501
      %v503 = vpop.f32.mrb[0].mxu0
      %v504 = vadd.f32 %v348, %v503
      %v505 = vpop.f32.mrb[0].mxu0
      %v506 = vadd.f32 %v344, %v505
      %v507 = vpop.f32.mrb[0].mxu0
      %v508 = vadd.f32 %v348, %v507
      %509 = vmatprep.mubr.bf16.mxu0 0
      %510 = vmatmul.mubr.bf16.gmra.mrb[0].mxu0 %v402
      %v511 = vpop.f32.mrb[0].mxu0
      %v512 = vadd.f32 %v344, %v511
      %v513 = vpop.f32.mrb[0].mxu0
      %v514 = vadd.f32 %v348, %v513
      %v515 = vpop.f32.mrb[0].mxu0
      %v516 = vadd.f32 %v344, %v515
      %v517 = vpop.f32.mrb[0].mxu0
      %v518 = vadd.f32 %v348, %v517
      %519 = vmatprep.mubr.bf16.mxu0 0
      %520 = vmatmul.mubr.bf16.gmra.mrb[0].mxu0 %v405
      %v521 = vpop.f32.mrb[0].mxu0
      %v522 = vadd.f32 %v344, %v521
      %v523 = vpop.f32.mrb[0].mxu0
      %v524 = vadd.f32 %v348, %v523
      %v525 = vpop.f32.mrb[0].mxu0
      %v526 = vadd.f32 %v344, %v525
      %v527 = vpop.f32.mrb[0].mxu0
      %v528 = vadd.f32 %v348, %v527
      %529 = vmatprep.mubr.bf16.mxu0 0
      %530 = vmatmul.mubr.bf16.gmra.mrb[0].mxu0 %v408
      %v531 = vpop.f32.mrb[0].mxu0
      %v532 = vadd.f32 %v344, %v531
      %v533 = vpop.f32.mrb[0].mxu0
      %v534 = vadd.f32 %v348, %v533
      %v535 = vpop.f32.mrb[0].mxu0
      %v536 = vadd.f32 %v344, %v535
      %v537 = vpop.f32.mrb[0].mxu0
      %v538 = vadd.f32 %v348, %v537
      %539 = vmatprep.mubr.bf16.mxu0 0
      %540 = vmatmul.mubr.bf16.gmra.mrb[0].mxu0 %v411
      %v541 = vpop.f32.mrb[0].mxu0
      %v542 = vadd.f32 %v344, %v541
      %v543 = vpop.f32.mrb[0].mxu0
      %v544 = vadd.f32 %v348, %v543
      %v545 = vpop.f32.mrb[0].mxu0
      %v546 = vadd.f32 %v344, %v545
      %v547 = vpop.f32.mrb[0].mxu0
      %v548 = vadd.f32 %v348, %v547
      %549 = vmatprep.mubr.bf16.mxu0 0
      %550 = vmatmul.mubr.bf16.gmra.mrb[0].mxu0 %v414
      %v551 = vpop.f32.mrb[0].mxu0
      %v552 = vadd.f32 %v344, %v551
      %v553 = vpop.f32.mrb[0].mxu0
      %v554 = vadd.f32 %v348, %v553
      %v555 = vpop.f32.mrb[0].mxu0
      %v556 = vadd.f32 %v344, %v555
      %v557 = vpop.f32.mrb[0].mxu0
      %v558 = vadd.f32 %v348, %v557
      %559 = vmatprep.mubr.bf16.mxu0 0
      %560 = vmatmul.mubr.bf16.gmra.mrb[0].mxu0 %v417
      %v561 = vpop.f32.mrb[0].mxu0
      %v562 = vadd.f32 %v344, %v561
      %v563 = vpop.f32.mrb[0].mxu0
      %v564 = vadd.f32 %v348, %v563
      %v565 = vpop.f32.mrb[0].mxu0
      %v566 = vadd.f32 %v344, %v565
      %v567 = vpop.f32.mrb[0].mxu0
      %v568 = vadd.f32 %v348, %v567
      %569 = vmatprep.mubr.bf16.mxu0 0
      %570 = vmatmul.mubr.bf16.gmra.mrb[0].mxu0 %v420
      %v571 = vpop.f32.mrb[0].mxu0
      %v572 = vadd.f32 %v344, %v571
      %v573 = vpop.f32.mrb[0].mxu0
      %v574 = vadd.f32 %v348, %v573
      %v575 = vpop.f32.mrb[0].mxu0
      %v576 = vadd.f32 %v344, %v575
      %v577 = vpop.f32.mrb[0].mxu0
      %v578 = vadd.f32 %v348, %v577
      %579 = vmatprep.mubr.bf16.mxu0 0
      %580 = vmatmul.mubr.bf16.gmra.mrb[0].mxu0 %v423
      %v581 = vpop.f32.mrb[0].mxu0
      %v582 = vadd.f32 %v344, %v581
      %v583 = vpop.f32.mrb[0].mxu0
      %v584 = vadd.f32 %v348, %v583
      %v585 = vpop.f32.mrb[0].mxu0
      %v586 = vadd.f32 %v344, %v585
      %v587 = vpop.f32.mrb[0].mxu0
      %v588 = vadd.f32 %v348, %v587
      %589 = vmatprep.mubr.bf16.mxu0 0
      %590 = vmatmul.mubr.bf16.gmra.mrb[0].mxu0 %v426
      %v591 = vpop.f32.mrb[0].mxu0
      %v592 = vadd.f32 %v344, %v591
      %v593 = vpop.f32.mrb[0].mxu0
      %v594 = vadd.f32 %v348, %v593
      %v595 = vpop.f32.mrb[0].mxu0
      %v596 = vadd.f32 %v344, %v595
      %v597 = vpop.f32.mrb[0].mxu0
      %v598 = vadd.f32 %v348, %v597
      %599 = vmatprep.mubr.bf16.mxu0 0
      %600 = vmatmul.mubr.bf16.gmra.mrb[0].mxu0 %v429
      %v601 = vpop.f32.mrb[0].mxu0
      %v602 = vadd.f32 %v344, %v601
      %v603 = vpop.f32.mrb[0].mxu0
      %v604 = vadd.f32 %v348, %v603
      %v605 = vpop.f32.mrb[0].mxu0
      %v606 = vadd.f32 %v344, %v605
      %v607 = vpop.f32.mrb[0].mxu0
      %v608 = vadd.f32 %v348, %v607
      %609 = vmatprep.mubr.bf16.mxu0 0
      %610 = vmatmul.mubr.bf16.gmra.mrb[0].mxu0 %v432
      %v611 = vpop.f32.mrb[0].mxu0
      %v612 = vadd.f32 %v344, %v611
      %v613 = vpop.f32.mrb[0].mxu0
      %v614 = vadd.f32 %v348, %v613
      %v615 = vpop.f32.mrb[0].mxu0
      %v616 = vadd.f32 %v344, %v615
      %v617 = vpop.f32.mrb[0].mxu0
      %v618 = vadd.f32 %v348, %v617
      %619 = vmatprep.mubr.bf16.mxu0 0
      %620 = vmatmul.mubr.bf16.gmra.mrb[0].mxu0 %v435
      %v621 = vpop.f32.mrb[0].mxu0
      %v622 = vadd.f32 %v344, %v621
      %v623 = vpop.f32.mrb[0].mxu0
      %v624 = vadd.f32 %v348, %v623
      %v625 = vpop.f32.mrb[0].mxu0
      %v626 = vadd.f32 %v344, %v625
      %v627 = vpop.f32.mrb[0].mxu0
      %v628 = vadd.f32 %v348, %v627
      %629 = vdwg.mxu0
      %630 = vmatprep.subr.bf16.mxu0 0
      %631 = vmatpush1.bf16.msra.mxu0 %v378
      %632 = vmatprep.subr.bf16.mxu0 0
      %633 = vmatpush1.bf16.msra.mxu0 %v381
      %634 = vmatprep.subr.bf16.mxu0 0
      %635 = vmatpush1.bf16.msra.mxu0 0
      %636 = vmatprep.subr.bf16.mxu0 0
      %637 = vmatpush1.bf16.msra.mxu0 0
      %638 = vmatprep.subr.bf16.mxu0 0
      %639 = vmatpush1.bf16.msra.mxu0 0
      %640 = vmatprep.subr.bf16.mxu0 0
      %641 = vmatpush1.bf16.msra.mxu0 0
      %642 = vmatprep.subr.bf16.mxu0 0
      %643 = vmatpush1.bf16.msra.mxu0 0
      %644 = vmatprep.subr.bf16.mxu0 0
      %645 = vmatpush1.bf16.msra.mxu0 0
      %646 = vmatprep.subr.bf16.mxu0 0
      %647 = vmatpush1.bf16.msra.mxu0 0
      %648 = vmatprep.subr.bf16.mxu0 0
      %649 = vmatpush1.bf16.msra.mxu0 0
      %650 = vmatprep.subr.bf16.mxu0 0
      %651 = vmatpush1.bf16.msra.mxu0 0
      %652 = vmatprep.subr.bf16.mxu0 0
      %653 = vmatpush1.bf16.msra.mxu0 0
      %654 = vmatprep.subr.bf16.mxu0 0
      %655 = vmatpush1.bf16.msra.mxu0 0
      %656 = vmatprep.subr.bf16.mxu0 0
      %657 = vmatpush1.bf16.msra.mxu0 0
      %658 = vmatprep.subr.bf16.mxu0 0
      %659 = vmatpush1.bf16.msra.mxu0 0
      %660 = vmatprep.subr.bf16.mxu0 0
      %661 = vmatpush1.bf16.msra.mxu0 0
      %662 = vmatprep.mubr.bf16.mxu0 0
      %663 = vmatmul.mubr.bf16.gmra.mrb[0].mxu0 %v390
      %v664 = vpop.f32.mrb[0].mxu0
      %v665 = vadd.f32 %v352, %v664
      %v666 = vpop.f32.mrb[0].mxu0
      %v667 = vpop.f32.mrb[0].mxu0
      %v668 = vadd.f32 %v352, %v667
      %v669 = vpop.f32.mrb[0].mxu0
      %670 = vmatprep.mubr.bf16.mxu0 0
      %671 = vmatmul.mubr.bf16.gmra.mrb[0].mxu0 %v393
      %v672 = vpop.f32.mrb[0].mxu0
      %v673 = vadd.f32 %v352, %v672
      %v674 = vpop.f32.mrb[0].mxu0
      %v675 = vpop.f32.mrb[0].mxu0
      %v676 = vadd.f32 %v352, %v675
      %v677 = vpop.f32.mrb[0].mxu0
      %678 = vmatprep.mubr.bf16.mxu0 0
      %679 = vmatmul.mubr.bf16.gmra.mrb[0].mxu0 %v396
      %v680 = vpop.f32.mrb[0].mxu0
      %v681 = vadd.f32 %v352, %v680
      %v682 = vpop.f32.mrb[0].mxu0
      %v683 = vpop.f32.mrb[0].mxu0
      %v684 = vadd.f32 %v352, %v683
      %v685 = vpop.f32.mrb[0].mxu0
      %686 = vmatprep.mubr.bf16.mxu0 0
      %687 = vmatmul.mubr.bf16.gmra.mrb[0].mxu0 %v399
      %v688 = vpop.f32.mrb[0].mxu0
      %v689 = vadd.f32 %v352, %v688
      %v690 = vpop.f32.mrb[0].mxu0
      %v691 = vpop.f32.mrb[0].mxu0
      %v692 = vadd.f32 %v352, %v691
      %v693 = vpop.f32.mrb[0].mxu0
      %694 = vmatprep.mubr.bf16.mxu0 0
      %695 = vmatmul.mubr.bf16.gmra.mrb[0].mxu0 %v402
      %v696 = vpop.f32.mrb[0].mxu0
      %v697 = vadd.f32 %v352, %v696
      %v698 = vpop.f32.mrb[0].mxu0
      %v699 = vpop.f32.mrb[0].mxu0
      %v700 = vadd.f32 %v352, %v699
      %v701 = vpop.f32.mrb[0].mxu0
      %702 = vmatprep.mubr.bf16.mxu0 0
      %703 = vmatmul.mubr.bf16.gmra.mrb[0].mxu0 %v405
      %v704 = vpop.f32.mrb[0].mxu0
      %v705 = vadd.f32 %v352, %v704
      %v706 = vpop.f32.mrb[0].mxu0
      %v707 = vpop.f32.mrb[0].mxu0
      %v708 = vadd.f32 %v352, %v707
      %v709 = vpop.f32.mrb[0].mxu0
      %710 = vmatprep.mubr.bf16.mxu0 0
      %711 = vmatmul.mubr.bf16.gmra.mrb[0].mxu0 %v408
      %v712 = vpop.f32.mrb[0].mxu0
      %v713 = vadd.f32 %v352, %v712
      %v714 = vpop.f32.mrb[0].mxu0
      %v715 = vpop.f32.mrb[0].mxu0
      %v716 = vadd.f32 %v352, %v715
      %v717 = vpop.f32.mrb[0].mxu0
      %718 = vmatprep.mubr.bf16.mxu0 0
      %719 = vmatmul.mubr.bf16.gmra.mrb[0].mxu0 %v411
      %v720 = vpop.f32.mrb[0].mxu0
      %v721 = vadd.f32 %v352, %v720
      %v722 = vpop.f32.mrb[0].mxu0
      %v723 = vpop.f32.mrb[0].mxu0
      %v724 = vadd.f32 %v352, %v723
      %v725 = vpop.f32.mrb[0].mxu0
      %726 = vmatprep.mubr.bf16.mxu0 0
      %727 = vmatmul.mubr.bf16.gmra.mrb[0].mxu0 %v414
      %v728 = vpop.f32.mrb[0].mxu0
      %v729 = vadd.f32 %v352, %v728
      %v730 = vpop.f32.mrb[0].mxu0
      %v731 = vpop.f32.mrb[0].mxu0
      %v732 = vadd.f32 %v352, %v731
      %v733 = vpop.f32.mrb[0].mxu0
      %734 = vmatprep.mubr.bf16.mxu0 0
      %735 = vmatmul.mubr.bf16.gmra.mrb[0].mxu0 %v417
      %v736 = vpop.f32.mrb[0].mxu0
      %v737 = vadd.f32 %v352, %v736
      %v738 = vpop.f32.mrb[0].mxu0
      %v739 = vpop.f32.mrb[0].mxu0
      %v740 = vadd.f32 %v352, %v739
      %v741 = vpop.f32.mrb[0].mxu0
      %742 = vmatprep.mubr.bf16.mxu0 0
      %743 = vmatmul.mubr.bf16.gmra.mrb[0].mxu0 %v420
      %v744 = vpop.f32.mrb[0].mxu0
      %v745 = vadd.f32 %v352, %v744
      %v746 = vpop.f32.mrb[0].mxu0
      %v747 = vpop.f32.mrb[0].mxu0
      %v748 = vadd.f32 %v352, %v747
      %v749 = vpop.f32.mrb[0].mxu0
      %750 = vmatprep.mubr.bf16.mxu0 0
      %751 = vmatmul.mubr.bf16.gmra.mrb[0].mxu0 %v423
      %v752 = vpop.f32.mrb[0].mxu0
      %v753 = vadd.f32 %v352, %v752
      %v754 = vpop.f32.mrb[0].mxu0
      %v755 = vpop.f32.mrb[0].mxu0
      %v756 = vadd.f32 %v352, %v755
      %v757 = vpop.f32.mrb[0].mxu0
      %758 = vmatprep.mubr.bf16.mxu0 0
      %759 = vmatmul.mubr.bf16.gmra.mrb[0].mxu0 %v426
      %v760 = vpop.f32.mrb[0].mxu0
      %v761 = vadd.f32 %v352, %v760
      %v762 = vpop.f32.mrb[0].mxu0
      %v763 = vpop.f32.mrb[0].mxu0
      %v764 = vadd.f32 %v352, %v763
      %v765 = vpop.f32.mrb[0].mxu0
      %766 = vmatprep.mubr.bf16.mxu0 0
      %767 = vmatmul.mubr.bf16.gmra.mrb[0].mxu0 %v429
      %v768 = vpop.f32.mrb[0].mxu0
      %v769 = vadd.f32 %v352, %v768
      %v770 = vpop.f32.mrb[0].mxu0
      %v771 = vpop.f32.mrb[0].mxu0
      %v772 = vadd.f32 %v352, %v771
      %v773 = vpop.f32.mrb[0].mxu0
      %774 = vmatprep.mubr.bf16.mxu0 0
      %775 = vmatmul.mubr.bf16.gmra.mrb[0].mxu0 %v432
      %v776 = vpop.f32.mrb[0].mxu0
      %v777 = vadd.f32 %v352, %v776
      %v778 = vpop.f32.mrb[0].mxu0
      %v779 = vpop.f32.mrb[0].mxu0
      %v780 = vadd.f32 %v352, %v779
      %v781 = vpop.f32.mrb[0].mxu0
      %782 = vmatprep.mubr.bf16.mxu0 0
      %783 = vmatmul.mubr.bf16.gmra.mrb[0].mxu0 %v435
      %v784 = vpop.f32.mrb[0].mxu0
      %v785 = vadd.f32 %v352, %v784
      %v786 = vpop.f32.mrb[0].mxu0
      %v787 = vpop.f32.mrb[0].mxu0
      %v788 = vadd.f32 %v352, %v787
      %v789 = vpop.f32.mrb[0].mxu0
      %790 = vdwg.mxu0
      %vm791 = vcmp.gt.f32.partialorder %v472, 0.0
      %vm792 = vcmp.gt.f32.partialorder %v474, 0.0
      %vm793 = vcmp.gt.f32.partialorder %v665, 0.0
      %vm794 = vcmp.gt.f32.partialorder %v476, 0.0
      %vm795 = vcmp.gt.f32.partialorder %v478, 0.0
      %vm796 = vcmp.gt.f32.partialorder %v668, 0.0
      %vm797 = vcmp.gt.f32.partialorder %v482, 0.0
      %vm798 = vcmp.gt.f32.partialorder %v484, 0.0
      %vm799 = vcmp.gt.f32.partialorder %v673, 0.0
      %vm800 = vcmp.gt.f32.partialorder %v486, 0.0
      %vm801 = vcmp.gt.f32.partialorder %v488, 0.0
      %vm802 = vcmp.gt.f32.partialorder %v676, 0.0
      %vm803 = vcmp.gt.f32.partialorder %v492, 0.0
      %vm804 = vcmp.gt.f32.partialorder %v494, 0.0
      %vm805 = vcmp.gt.f32.partialorder %v681, 0.0
      %vm806 = vcmp.gt.f32.partialorder %v496, 0.0
      %vm807 = vcmp.gt.f32.partialorder %v498, 0.0
      %vm808 = vcmp.gt.f32.partialorder %v684, 0.0
      %vm809 = vcmp.gt.f32.partialorder %v502, 0.0
      %vm810 = vcmp.gt.f32.partialorder %v504, 0.0
      %vm811 = vcmp.gt.f32.partialorder %v689, 0.0
      %vm812 = vcmp.gt.f32.partialorder %v506, 0.0
      %vm813 = vcmp.gt.f32.partialorder %v508, 0.0
      %vm814 = vcmp.gt.f32.partialorder %v692, 0.0
      %vm815 = vcmp.gt.f32.partialorder %v512, 0.0
      %vm816 = vcmp.gt.f32.partialorder %v514, 0.0
      %vm817 = vcmp.gt.f32.partialorder %v697, 0.0
      %vm818 = vcmp.gt.f32.partialorder %v516, 0.0
      %vm819 = vcmp.gt.f32.partialorder %v518, 0.0
      %vm820 = vcmp.gt.f32.partialorder %v700, 0.0
      %vm821 = vcmp.gt.f32.partialorder %v522, 0.0
      %vm822 = vcmp.gt.f32.partialorder %v524, 0.0
      %vm823 = vcmp.gt.f32.partialorder %v705, 0.0
      %vm824 = vcmp.gt.f32.partialorder %v526, 0.0
      %vm825 = vcmp.gt.f32.partialorder %v528, 0.0
      %vm826 = vcmp.gt.f32.partialorder %v708, 0.0
      %vm827 = vcmp.gt.f32.partialorder %v532, 0.0
      %vm828 = vcmp.gt.f32.partialorder %v534, 0.0
      %vm829 = vcmp.gt.f32.partialorder %v713, 0.0
      %vm830 = vcmp.gt.f32.partialorder %v536, 0.0
      %vm831 = vcmp.gt.f32.partialorder %v538, 0.0
      %vm832 = vcmp.gt.f32.partialorder %v716, 0.0
      %vm833 = vcmp.gt.f32.partialorder %v542, 0.0
      %vm834 = vcmp.gt.f32.partialorder %v544, 0.0
      %vm835 = vcmp.gt.f32.partialorder %v721, 0.0
      %vm836 = vcmp.gt.f32.partialorder %v546, 0.0
      %vm837 = vcmp.gt.f32.partialorder %v548, 0.0
      %vm838 = vcmp.gt.f32.partialorder %v724, 0.0
      %vm839 = vcmp.gt.f32.partialorder %v552, 0.0
      %vm840 = vcmp.gt.f32.partialorder %v554, 0.0
      %vm841 = vcmp.gt.f32.partialorder %v729, 0.0
      %vm842 = vcmp.gt.f32.partialorder %v556, 0.0
      %vm843 = vcmp.gt.f32.partialorder %v558, 0.0
      %vm844 = vcmp.gt.f32.partialorder %v732, 0.0
      %vm845 = vcmp.gt.f32.partialorder %v562, 0.0
      %vm846 = vcmp.gt.f32.partialorder %v564, 0.0
      %vm847 = vcmp.gt.f32.partialorder %v737, 0.0
      %vm848 = vcmp.gt.f32.partialorder %v566, 0.0
      %vm849 = vcmp.gt.f32.partialorder %v568, 0.0
      %vm850 = vcmp.gt.f32.partialorder %v740, 0.0
      %vm851 = vcmp.gt.f32.partialorder %v572, 0.0
      %vm852 = vcmp.gt.f32.partialorder %v574, 0.0
      %vm853 = vcmp.gt.f32.partialorder %v745, 0.0
      %vm854 = vcmp.gt.f32.partialorder %v576, 0.0
      %vm855 = vcmp.gt.f32.partialorder %v578, 0.0
      %vm856 = vcmp.gt.f32.partialorder %v748, 0.0
      %vm857 = vcmp.gt.f32.partialorder %v582, 0.0
      %vm858 = vcmp.gt.f32.partialorder %v584, 0.0
      %vm859 = vcmp.gt.f32.partialorder %v753, 0.0
      %vm860 = vcmp.gt.f32.partialorder %v586, 0.0
      %vm861 = vcmp.gt.f32.partialorder %v588, 0.0
      %vm862 = vcmp.gt.f32.partialorder %v756, 0.0
      %vm863 = vcmp.gt.f32.partialorder %v592, 0.0
      %vm864 = vcmp.gt.f32.partialorder %v594, 0.0
      %vm865 = vcmp.gt.f32.partialorder %v761, 0.0
      %vm866 = vcmp.gt.f32.partialorder %v596, 0.0
      %vm867 = vcmp.gt.f32.partialorder %v598, 0.0
      %vm868 = vcmp.gt.f32.partialorder %v764, 0.0
      %vm869 = vcmp.gt.f32.partialorder %v602, 0.0
      %vm870 = vcmp.gt.f32.partialorder %v604, 0.0
      %vm871 = vcmp.gt.f32.partialorder %v769, 0.0
      %vm872 = vcmp.gt.f32.partialorder %v606, 0.0
      %vm873 = vcmp.gt.f32.partialorder %v608, 0.0
      %vm874 = vcmp.gt.f32.partialorder %v772, 0.0
      %vm875 = vcmp.gt.f32.partialorder %v612, 0.0
      %vm876 = vcmp.gt.f32.partialorder %v614, 0.0
      %vm877 = vcmp.gt.f32.partialorder %v777, 0.0
      %vm878 = vcmp.gt.f32.partialorder %v616, 0.0
      %vm879 = vcmp.gt.f32.partialorder %v618, 0.0
      %vm880 = vcmp.gt.f32.partialorder %v780, 0.0
      %vm881 = vcmp.gt.f32.partialorder %v622, 0.0
      %vm882 = vcmp.gt.f32.partialorder %v624, 0.0
      %vm883 = vcmp.gt.f32.partialorder %v785, 0.0
      %vm884 = vcmp.gt.f32.partialorder %v626, 0.0
      %vm885 = vcmp.gt.f32.partialorder %v628, 0.0
      %vm886 = vcmp.gt.f32.partialorder %v788, 0.0
      %v887 = vmul.f32 %v472, 0.01
      %v888 = vmul.f32 %v474, 0.01
      %v889 = vmul.f32 %v665, 0.01
      %v890 = vmul.f32 %v476, 0.01
      %v891 = vmul.f32 %v478, 0.01
      %v892 = vmul.f32 %v668, 0.01
      %v893 = vmul.f32 %v482, 0.01
      %v894 = vmul.f32 %v484, 0.01
      %v895 = vmul.f32 %v673, 0.01
      %v896 = vmul.f32 %v486, 0.01
      %v897 = vmul.f32 %v488, 0.01
      %v898 = vmul.f32 %v676, 0.01
      %v899 = vmul.f32 %v492, 0.01
      %v900 = vmul.f32 %v494, 0.01
      %v901 = vmul.f32 %v681, 0.01
      %v902 = vmul.f32 %v496, 0.01
      %v903 = vmul.f32 %v498, 0.01
      %v904 = vmul.f32 %v684, 0.01
      %v905 = vmul.f32 %v502, 0.01
      %v906 = vmul.f32 %v504, 0.01
      %v907 = vmul.f32 %v689, 0.01
      %v908 = vmul.f32 %v506, 0.01
      %v909 = vmul.f32 %v508, 0.01
      %v910 = vmul.f32 %v692, 0.01
      %v911 = vmul.f32 %v512, 0.01
      %v912 = vmul.f32 %v514, 0.01
      %v913 = vmul.f32 %v697, 0.01
      %v914 = vmul.f32 %v516, 0.01
      %v915 = vmul.f32 %v518, 0.01
      %v916 = vmul.f32 %v700, 0.01
      %v917 = vmul.f32 %v522, 0.01
      %v918 = vmul.f32 %v524, 0.01
      %v919 = vmul.f32 %v705, 0.01
      %v920 = vmul.f32 %v526, 0.01
      %v921 = vmul.f32 %v528, 0.01
      %v922 = vmul.f32 %v708, 0.01
      %v923 = vmul.f32 %v532, 0.01
      %v924 = vmul.f32 %v534, 0.01
      %v925 = vmul.f32 %v713, 0.01
      %v926 = vmul.f32 %v536, 0.01
      %v927 = vmul.f32 %v538, 0.01
      %v928 = vmul.f32 %v716, 0.01
      %v929 = vmul.f32 %v542, 0.01
      %v930 = vmul.f32 %v544, 0.01
      %v931 = vmul.f32 %v721, 0.01
      %v932 = vmul.f32 %v546, 0.01
      %v933 = vmul.f32 %v548, 0.01
      %v934 = vmul.f32 %v724, 0.01
      %v935 = vmul.f32 %v552, 0.01
      %v936 = vmul.f32 %v554, 0.01
      %v937 = vmul.f32 %v729, 0.01
      %v938 = vmul.f32 %v556, 0.01
      %v939 = vmul.f32 %v558, 0.01
      %v940 = vmul.f32 %v732, 0.01
      %v941 = vmul.f32 %v562, 0.01
      %v942 = vmul.f32 %v564, 0.01
      %v943 = vmul.f32 %v737, 0.01
      %v944 = vmul.f32 %v566, 0.01
      %v945 = vmul.f32 %v568, 0.01
      %v946 = vmul.f32 %v740, 0.01
      %v947 = vmul.f32 %v572, 0.01
      %v948 = vmul.f32 %v574, 0.01
      %v949 = vmul.f32 %v745, 0.01
      %v950 = vmul.f32 %v576, 0.01
      %v951 = vmul.f32 %v578, 0.01
      %v952 = vmul.f32 %v748, 0.01
      %v953 = vmul.f32 %v582, 0.01
      %v954 = vmul.f32 %v584, 0.01
      %v955 = vmul.f32 %v753, 0.01
      %v956 = vmul.f32 %v586, 0.01
      %v957 = vmul.f32 %v588, 0.01
      %v958 = vmul.f32 %v756, 0.01
      %v959 = vmul.f32 %v592, 0.01
      %v960 = vmul.f32 %v594, 0.01
      %v961 = vmul.f32 %v761, 0.01
      %v962 = vmul.f32 %v596, 0.01
      %v963 = vmul.f32 %v598, 0.01
      %v964 = vmul.f32 %v764, 0.01
      %v965 = vmul.f32 %v602, 0.01
      %v966 = vmul.f32 %v604, 0.01
      %v967 = vmul.f32 %v769, 0.01
      %v968 = vmul.f32 %v606, 0.01
      %v969 = vmul.f32 %v608, 0.01
      %v970 = vmul.f32 %v772, 0.01
      %v971 = vmul.f32 %v612, 0.01
      %v972 = vmul.f32 %v614, 0.01
      %v973 = vmul.f32 %v777, 0.01
      %v974 = vmul.f32 %v616, 0.01
      %v975 = vmul.f32 %v618, 0.01
      %v976 = vmul.f32 %v780, 0.01
      %v977 = vmul.f32 %v622, 0.01
      %v978 = vmul.f32 %v624, 0.01
      %v979 = vmul.f32 %v785, 0.01
      %v980 = vmul.f32 %v626, 0.01
      %v981 = vmul.f32 %v628, 0.01
      %v982 = vmul.f32 %v788, 0.01
      %v983 = vsel %vm791, %v472, %v887
      %v984 = vsel %vm792, %v474, %v888
      %v985 = vsel %vm793, %v665, %v889
      %v986 = vsel %vm794, %v476, %v890
      %v987 = vsel %vm795, %v478, %v891
      %v988 = vsel %vm796, %v668, %v892
      %v989 = vsel %vm797, %v482, %v893
      %v990 = vsel %vm798, %v484, %v894
      %v991 = vsel %vm799, %v673, %v895
      %v992 = vsel %vm800, %v486, %v896
      %v993 = vsel %vm801, %v488, %v897
      %v994 = vsel %vm802, %v676, %v898
      %v995 = vsel %vm803, %v492, %v899
      %v996 = vsel %vm804, %v494, %v900
      %v997 = vsel %vm805, %v681, %v901
      %v998 = vsel %vm806, %v496, %v902
      %v999 = vsel %vm807, %v498, %v903
      %v1000 = vsel %vm808, %v684, %v904
      %v1001 = vsel %vm809, %v502, %v905
      %v1002 = vsel %vm810, %v504, %v906
      %v1003 = vsel %vm811, %v689, %v907
      %v1004 = vsel %vm812, %v506, %v908
      %v1005 = vsel %vm813, %v508, %v909
      %v1006 = vsel %vm814, %v692, %v910
      %v1007 = vsel %vm815, %v512, %v911
      %v1008 = vsel %vm816, %v514, %v912
      %v1009 = vsel %vm817, %v697, %v913
      %v1010 = vsel %vm818, %v516, %v914
      %v1011 = vsel %vm819, %v518, %v915
      %v1012 = vsel %vm820, %v700, %v916
      %v1013 = vsel %vm821, %v522, %v917
      %v1014 = vsel %vm822, %v524, %v918
      %v1015 = vsel %vm823, %v705, %v919
      %v1016 = vsel %vm824, %v526, %v920
      %v1017 = vsel %vm825, %v528, %v921
      %v1018 = vsel %vm826, %v708, %v922
      %v1019 = vsel %vm827, %v532, %v923
      %v1020 = vsel %vm828, %v534, %v924
      %v1021 = vsel %vm829, %v713, %v925
      %v1022 = vsel %vm830, %v536, %v926
      %v1023 = vsel %vm831, %v538, %v927
      %v1024 = vsel %vm832, %v716, %v928
      %v1025 = vsel %vm833, %v542, %v929
      %v1026 = vsel %vm834, %v544, %v930
      %v1027 = vsel %vm835, %v721, %v931
      %v1028 = vsel %vm836, %v546, %v932
      %v1029 = vsel %vm837, %v548, %v933
      %v1030 = vsel %vm838, %v724, %v934
      %v1031 = vsel %vm839, %v552, %v935
      %v1032 = vsel %vm840, %v554, %v936
      %v1033 = vsel %vm841, %v729, %v937
      %v1034 = vsel %vm842, %v556, %v938
      %v1035 = vsel %vm843, %v558, %v939
      %v1036 = vsel %vm844, %v732, %v940
      %v1037 = vsel %vm845, %v562, %v941
      %v1038 = vsel %vm846, %v564, %v942
      %v1039 = vsel %vm847, %v737, %v943
      %v1040 = vsel %vm848, %v566, %v944
      %v1041 = vsel %vm849, %v568, %v945
      %v1042 = vsel %vm850, %v740, %v946
      %v1043 = vsel %vm851, %v572, %v947
      %v1044 = vsel %vm852, %v574, %v948
      %v1045 = vsel %vm853, %v745, %v949
      %v1046 = vsel %vm854, %v576, %v950
      %v1047 = vsel %vm855, %v578, %v951
      %v1048 = vsel %vm856, %v748, %v952
      %v1049 = vsel %vm857, %v582, %v953
      %v1050 = vsel %vm858, %v584, %v954
      %v1051 = vsel %vm859, %v753, %v955
      %v1052 = vsel %vm860, %v586, %v956
      %v1053 = vsel %vm861, %v588, %v957
      %v1054 = vsel %vm862, %v756, %v958
      %v1055 = vsel %vm863, %v592, %v959
      %v1056 = vsel %vm864, %v594, %v960
      %v1057 = vsel %vm865, %v761, %v961
      %v1058 = vsel %vm866, %v596, %v962
      %v1059 = vsel %vm867, %v598, %v963
      %v1060 = vsel %vm868, %v764, %v964
      %v1061 = vsel %vm869, %v602, %v965
      %v1062 = vsel %vm870, %v604, %v966
      %v1063 = vsel %vm871, %v769, %v967
      %v1064 = vsel %vm872, %v606, %v968
      %v1065 = vsel %vm873, %v608, %v969
      %v1066 = vsel %vm874, %v772, %v970
      %v1067 = vsel %vm875, %v612, %v971
      %v1068 = vsel %vm876, %v614, %v972
      %v1069 = vsel %vm877, %v777, %v973
      %v1070 = vsel %vm878, %v616, %v974
      %v1071 = vsel %vm879, %v618, %v975
      %v1072 = vsel %vm880, %v780, %v976
      %v1073 = vsel %vm881, %v622, %v977
      %v1074 = vsel %vm882, %v624, %v978
      %v1075 = vsel %vm883, %v785, %v979
      %v1076 = vsel %vm884, %v626, %v980
      %v1077 = vsel %vm885, %v628, %v981
      %v1078 = vsel %vm886, %v788, %v982
      %v1079 = vpack.c.bf16 %v986, %v983
      %v1080 = vpack.c.bf16 %v987, %v984
      %v1081 = vpack.c.bf16 %v988, %v985
      %v1082 = vpack.c.bf16 %v992, %v989
      %v1083 = vpack.c.bf16 %v993, %v990
      %v1084 = vpack.c.bf16 %v994, %v991
      %v1085 = vpack.c.bf16 %v998, %v995
      %v1086 = vpack.c.bf16 %v999, %v996
      %v1087 = vpack.c.bf16 %v1000, %v997
      %v1088 = vpack.c.bf16 %v1004, %v1001
      %v1089 = vpack.c.bf16 %v1005, %v1002
      %v1090 = vpack.c.bf16 %v1006, %v1003
      %v1091 = vpack.c.bf16 %v1010, %v1007
      %v1092 = vpack.c.bf16 %v1011, %v1008
      %v1093 = vpack.c.bf16 %v1012, %v1009
      %v1094 = vpack.c.bf16 %v1016, %v1013
      %v1095 = vpack.c.bf16 %v1017, %v1014
      %v1096 = vpack.c.bf16 %v1018, %v1015
      %v1097 = vpack.c.bf16 %v1022, %v1019
      %v1098 = vpack.c.bf16 %v1023, %v1020
      %v1099 = vpack.c.bf16 %v1024, %v1021
      %v1100 = vpack.c.bf16 %v1028, %v1025
      %v1101 = vpack.c.bf16 %v1029, %v1026
      %v1102 = vpack.c.bf16 %v1030, %v1027
      %v1103 = vpack.c.bf16 %v1034, %v1031
      %v1104 = vpack.c.bf16 %v1035, %v1032
      %v1105 = vpack.c.bf16 %v1036, %v1033
      %v1106 = vpack.c.bf16 %v1040, %v1037
      %v1107 = vpack.c.bf16 %v1041, %v1038
      %v1108 = vpack.c.bf16 %v1042, %v1039
      %v1109 = vpack.c.bf16 %v1046, %v1043
      %v1110 = vpack.c.bf16 %v1047, %v1044
      %v1111 = vpack.c.bf16 %v1048, %v1045
      %v1112 = vpack.c.bf16 %v1052, %v1049
      %v1113 = vpack.c.bf16 %v1053, %v1050
      %v1114 = vpack.c.bf16 %v1054, %v1051
      %v1115 = vpack.c.bf16 %v1058, %v1055
      %v1116 = vpack.c.bf16 %v1059, %v1056
      %v1117 = vpack.c.bf16 %v1060, %v1057
      %v1118 = vpack.c.bf16 %v1064, %v1061
      %v1119 = vpack.c.bf16 %v1065, %v1062
      %v1120 = vpack.c.bf16 %v1066, %v1063
      %v1121 = vpack.c.bf16 %v1070, %v1067
      %v1122 = vpack.c.bf16 %v1071, %v1068
      %v1123 = vpack.c.bf16 %v1072, %v1069
      %v1124 = vpack.c.bf16 %v1076, %v1073
      %v1125 = vpack.c.bf16 %v1077, %v1074
      %v1126 = vpack.c.bf16 %v1078, %v1075
      %v1127 = vld [vmem:[%s3] sm:$0xf]
      %v1128 = vld [vmem:[%s3 + $0x4] sm:$0xf]
      %v1129 = vld [vmem:[%s3 + $0x8] sm:$0xf]
      %v1130 = vld [vmem:[%s3 + $0xc] sm:$0xf]
      %v1131 = vld [vmem:[%s3 + $0x10] sm:$0xf]
      %v1132 = vld [vmem:[%s3 + $0x14] sm:$0xf]
      %v1133 = vld [vmem:[%s3 + $0x18] sm:$0xf]
      %v1134 = vld [vmem:[%s3 + $0x1c] sm:$0xf]
      %v1135 = vld [vmem:[%s3 + $0x20] sm:$0xf]
      %v1136 = vld [vmem:[%s3 + $0x24] sm:$0xf]
      %v1137 = vld [vmem:[%s3 + $0x28] sm:$0xf]
      %v1138 = vld [vmem:[%s3 + $0x2c] sm:$0xf]
      %v1139 = vld [vmem:[%s3 + $0x30] sm:$0xf]
      %v1140 = vld [vmem:[%s3 + $0x34] sm:$0xf]
      %v1141 = vld [vmem:[%s3 + $0x38] sm:$0xf]
      %v1142 = vld [vmem:[%s3 + $0x3c] sm:$0xf]
      %v1143 = vld [vmem:[%s3 + $0x40] sm:$0xf]
      %v1144 = vld [vmem:[%s3 + $0x44] sm:$0xf]
      %v1145 = vld [vmem:[%s3 + $0x48] sm:$0xf]
      %v1146 = vld [vmem:[%s3 + $0x4c] sm:$0xf]
      %v1147 = vld [vmem:[%s3 + $0x50] sm:$0xf]
      %v1148 = vld [vmem:[%s3 + $0x54] sm:$0xf]
      %v1149 = vld [vmem:[%s3 + $0x58] sm:$0xf]
      %v1150 = vld [vmem:[%s3 + $0x5c] sm:$0xf]
      %v1151 = vld [vmem:[%s3 + $0x60] sm:$0xf]
      %v1152 = vld [vmem:[%s3 + $0x64] sm:$0xf]
      %v1153 = vld [vmem:[%s3 + $0x68] sm:$0xf]
      %v1154 = vld [vmem:[%s3 + $0x6c] sm:$0xf]
      %v1155 = vld [vmem:[%s3 + $0x70] sm:$0xf]
      %v1156 = vld [vmem:[%s3 + $0x74] sm:$0xf]
      %v1157 = vld [vmem:[%s3 + $0x78] sm:$0xf]
      %v1158 = vld [vmem:[%s3 + $0x7c] sm:$0xf]
      %v1159 = vld [vmem:[%s3 + $0x80] sm:$0xf]
      %v1160 = vld [vmem:[%s3 + $0x84] sm:$0xf]
      %v1161 = vld [vmem:[%s3 + $0x88] sm:$0xf]
      %v1162 = vld [vmem:[%s3 + $0x8c] sm:$0xf]
      %v1163 = vld [vmem:[%s3 + $0x90] sm:$0xf]
      %v1164 = vld [vmem:[%s3 + $0x94] sm:$0xf]
      %v1165 = vld [vmem:[%s3 + $0x98] sm:$0xf]
      %v1166 = vld [vmem:[%s3 + $0x9c] sm:$0xf]
      %v1167 = vld [vmem:[%s3 + $0xa0] sm:$0xf]
      %v1168 = vld [vmem:[%s3 + $0xa4] sm:$0xf]
      %v1169 = vld [vmem:[%s3 + $0xa8] sm:$0xf]
      %v1170 = vld [vmem:[%s3 + $0xac] sm:$0xf]
      %v1171 = vld [vmem:[%s3 + $0xb0] sm:$0xf]
      %v1172 = vld [vmem:[%s3 + $0xb4] sm:$0xf]
      %v1173 = vld [vmem:[%s3 + $0xb8] sm:$0xf]
      %v1174 = vld [vmem:[%s3 + $0xbc] sm:$0xf]
      %v1175 = vld [vmem:[%s4] sm:$0x1]
      %v1177 = vlaneseq
      %v1178 = vshrl.u32 %v1177, 7
      %v1179 = vsub.s32 0, %v1178
      %v1180 = vrot.slane %v1175, %v1179
      %v1230 = vunpack.c.l.b16 %v1127
      %v1231 = vunpack.c.l.b16 %v1128
      %v1232 = vunpack.c.l.b16 %v1129
      %v1233 = vunpack.c.l.b16 %v1130
      %v1234 = vunpack.c.l.b16 %v1131
      %v1235 = vunpack.c.l.b16 %v1132
      %v1236 = vunpack.c.l.b16 %v1133
      %v1237 = vunpack.c.l.b16 %v1134
      %v1238 = vunpack.c.l.b16 %v1135
      %v1239 = vunpack.c.l.b16 %v1136
      %v1240 = vunpack.c.l.b16 %v1137
      %v1241 = vunpack.c.l.b16 %v1138
      %v1242 = vunpack.c.l.b16 %v1139
      %v1243 = vunpack.c.l.b16 %v1140
      %v1244 = vunpack.c.l.b16 %v1141
      %v1245 = vunpack.c.l.b16 %v1142
      %v1246 = vunpack.c.l.b16 %v1143
      %v1247 = vunpack.c.l.b16 %v1144
      %v1248 = vunpack.c.l.b16 %v1145
      %v1249 = vunpack.c.l.b16 %v1146
      %v1250 = vunpack.c.l.b16 %v1147
      %v1251 = vunpack.c.l.b16 %v1148
      %v1252 = vunpack.c.l.b16 %v1149
      %v1253 = vunpack.c.l.b16 %v1150
      %v1254 = vunpack.c.l.b16 %v1151
      %v1255 = vunpack.c.l.b16 %v1152
      %v1256 = vunpack.c.l.b16 %v1153
      %v1257 = vunpack.c.l.b16 %v1154
      %v1258 = vunpack.c.l.b16 %v1155
      %v1259 = vunpack.c.l.b16 %v1156
      %v1260 = vunpack.c.l.b16 %v1157
      %v1261 = vunpack.c.l.b16 %v1158
      %v1262 = vunpack.c.l.b16 %v1159
      %v1263 = vunpack.c.l.b16 %v1160
      %v1264 = vunpack.c.l.b16 %v1161
      %v1265 = vunpack.c.l.b16 %v1162
      %v1266 = vunpack.c.l.b16 %v1163
      %v1267 = vunpack.c.l.b16 %v1164
      %v1268 = vunpack.c.l.b16 %v1165
      %v1269 = vunpack.c.l.b16 %v1166
      %v1270 = vunpack.c.l.b16 %v1167
      %v1271 = vunpack.c.l.b16 %v1168
      %v1272 = vunpack.c.l.b16 %v1169
      %v1273 = vunpack.c.l.b16 %v1170
      %v1274 = vunpack.c.l.b16 %v1171
      %v1275 = vunpack.c.l.b16 %v1172
      %v1276 = vunpack.c.l.b16 %v1173
      %v1277 = vunpack.c.l.b16 %v1174
      %v1278 = vpack.c.b16 %v1231, %v1230
      %v1279 = vpack.c.b16 %v1233, %v1232
      %v1280 = vpack.c.b16 %v1235, %v1234
      %v1281 = vpack.c.b16 %v1237, %v1236
      %v1282 = vpack.c.b16 %v1239, %v1238
      %v1283 = vpack.c.b16 %v1241, %v1240
      %v1284 = vpack.c.b16 %v1243, %v1242
      %v1285 = vpack.c.b16 %v1245, %v1244
      %v1286 = vpack.c.b16 %v1247, %v1246
      %v1287 = vpack.c.b16 %v1249, %v1248
      %v1288 = vpack.c.b16 %v1251, %v1250
      %v1289 = vpack.c.b16 %v1253, %v1252
      %v1290 = vpack.c.b16 %v1255, %v1254
      %v1291 = vpack.c.b16 %v1257, %v1256
      %v1292 = vpack.c.b16 %v1259, %v1258
      %v1293 = vpack.c.b16 %v1261, %v1260
      %v1294 = vpack.c.b16 %v1263, %v1262
      %v1295 = vpack.c.b16 %v1265, %v1264
      %v1296 = vpack.c.b16 %v1267, %v1266
      %v1297 = vpack.c.b16 %v1269, %v1268
      %v1298 = vpack.c.b16 %v1271, %v1270
      %v1299 = vpack.c.b16 %v1273, %v1272
      %v1300 = vpack.c.b16 %v1275, %v1274
      %v1301 = vpack.c.b16 %v1277, %v1276
      %1326 = vmatprep.subr.bf16.mxu0 0
      %1327 = vmatpush1.bf16.msra.mxu0 %v1278
      %1328 = vmatprep.subr.bf16.mxu0 0
      %1329 = vmatpush1.bf16.msra.mxu0 %v1279
      %1330 = vmatprep.subr.bf16.mxu0 0
      %1331 = vmatpush1.bf16.msra.mxu0 %v1280
      %1332 = vmatprep.subr.bf16.mxu0 0
      %1333 = vmatpush1.bf16.msra.mxu0 %v1281
      %1334 = vmatprep.subr.bf16.mxu0 0
      %1335 = vmatpush1.bf16.msra.mxu0 %v1282
      %1336 = vmatprep.subr.bf16.mxu0 0
      %1337 = vmatpush1.bf16.msra.mxu0 %v1283
      %1338 = vmatprep.subr.bf16.mxu0 0
      %1339 = vmatpush1.bf16.msra.mxu0 %v1284
      %1340 = vmatprep.subr.bf16.mxu0 0
      %1341 = vmatpush1.bf16.msra.mxu0 %v1285
      %1342 = vmatprep.subr.bf16.mxu0 0
      %1343 = vmatpush1.bf16.msra.mxu0 %v1286
      %1344 = vmatprep.subr.bf16.mxu0 0
      %1345 = vmatpush1.bf16.msra.mxu0 %v1287
      %1346 = vmatprep.subr.bf16.mxu0 0
      %1347 = vmatpush1.bf16.msra.mxu0 %v1288
      %1348 = vmatprep.subr.bf16.mxu0 0
      %1349 = vmatpush1.bf16.msra.mxu0 %v1289
      %1350 = vmatprep.subr.bf16.mxu0 0
      %1351 = vmatpush1.bf16.msra.mxu0 %v1290
      %1352 = vmatprep.subr.bf16.mxu0 0
      %1353 = vmatpush1.bf16.msra.mxu0 %v1291
      %1354 = vmatprep.subr.bf16.mxu0 0
      %1355 = vmatpush1.bf16.msra.mxu0 %v1292
      %1356 = vmatprep.subr.bf16.mxu0 0
      %1357 = vmatpush1.bf16.msra.mxu0 %v1293
      %1358 = vmatprep.mubr.bf16.mxu0 %v1080
      %1359 = vmatmul.mubr.bf16.gmra.mrb[0].mxu0 %v1079
      %v1360 = vpop.f32.mrb[0].mxu0
      %v1361 = vadd.f32 %v1180, %v1360
      %v1362 = vpop.f32.mrb[0].mxu0
      %v1363 = vpop.f32.mrb[0].mxu0
      %v1364 = vadd.f32 %v1180, %v1363
      %v1365 = vpop.f32.mrb[0].mxu0
      %1366 = vmatprep.mubr.bf16.mxu0 %v1083
      %1367 = vmatmul.mubr.bf16.gmra.mrb[0].mxu0 %v1082
      %v1368 = vpop.f32.mrb[0].mxu0
      %v1369 = vadd.f32 %v1180, %v1368
      %v1370 = vpop.f32.mrb[0].mxu0
      %v1371 = vpop.f32.mrb[0].mxu0
      %v1372 = vadd.f32 %v1180, %v1371
      %v1373 = vpop.f32.mrb[0].mxu0
      %1374 = vmatprep.mubr.bf16.mxu0 %v1086
      %1375 = vmatmul.mubr.bf16.gmra.mrb[0].mxu0 %v1085
      %v1376 = vpop.f32.mrb[0].mxu0
      %v1377 = vadd.f32 %v1180, %v1376
      %v1378 = vpop.f32.mrb[0].mxu0
      %v1379 = vpop.f32.mrb[0].mxu0
      %v1380 = vadd.f32 %v1180, %v1379
      %v1381 = vpop.f32.mrb[0].mxu0
      %1382 = vmatprep.mubr.bf16.mxu0 %v1089
      %1383 = vmatmul.mubr.bf16.gmra.mrb[0].mxu0 %v1088
      %v1384 = vpop.f32.mrb[0].mxu0
      %v1385 = vadd.f32 %v1180, %v1384
      %v1386 = vpop.f32.mrb[0].mxu0
      %v1387 = vpop.f32.mrb[0].mxu0
      %v1388 = vadd.f32 %v1180, %v1387
      %v1389 = vpop.f32.mrb[0].mxu0
      %1390 = vmatprep.mubr.bf16.mxu0 %v1092
      %1391 = vmatmul.mubr.bf16.gmra.mrb[0].mxu0 %v1091
      %v1392 = vpop.f32.mrb[0].mxu0
      %v1393 = vadd.f32 %v1180, %v1392
      %v1394 = vpop.f32.mrb[0].mxu0
      %v1395 = vpop.f32.mrb[0].mxu0
      %v1396 = vadd.f32 %v1180, %v1395
      %v1397 = vpop.f32.mrb[0].mxu0
      %1398 = vmatprep.mubr.bf16.mxu0 %v1095
      %1399 = vmatmul.mubr.bf16.gmra.mrb[0].mxu0 %v1094
      %v1400 = vpop.f32.mrb[0].mxu0
      %v1401 = vadd.f32 %v1180, %v1400
      %v1402 = vpop.f32.mrb[0].mxu0
      %v1403 = vpop.f32.mrb[0].mxu0
      %v1404 = vadd.f32 %v1180, %v1403
      %v1405 = vpop.f32.mrb[0].mxu0
      %1406 = vmatprep.mubr.bf16.mxu0 %v1098
      %1407 = vmatmul.mubr.bf16.gmra.mrb[0].mxu0 %v1097
      %v1408 = vpop.f32.mrb[0].mxu0
      %v1409 = vadd.f32 %v1180, %v1408
      %v1410 = vpop.f32.mrb[0].mxu0
      %v1411 = vpop.f32.mrb[0].mxu0
      %v1412 = vadd.f32 %v1180, %v1411
      %v1413 = vpop.f32.mrb[0].mxu0
      %1414 = vmatprep.mubr.bf16.mxu0 %v1101
      %1415 = vmatmul.mubr.bf16.gmra.mrb[0].mxu0 %v1100
      %v1416 = vpop.f32.mrb[0].mxu0
      %v1417 = vadd.f32 %v1180, %v1416
      %v1418 = vpop.f32.mrb[0].mxu0
      %v1419 = vpop.f32.mrb[0].mxu0
      %v1420 = vadd.f32 %v1180, %v1419
      %v1421 = vpop.f32.mrb[0].mxu0
      %1422 = vmatprep.mubr.bf16.mxu0 %v1104
      %1423 = vmatmul.mubr.bf16.gmra.mrb[0].mxu0 %v1103
      %v1424 = vpop.f32.mrb[0].mxu0
      %v1425 = vadd.f32 %v1180, %v1424
      %v1426 = vpop.f32.mrb[0].mxu0
      %v1427 = vpop.f32.mrb[0].mxu0
      %v1428 = vadd.f32 %v1180, %v1427
      %v1429 = vpop.f32.mrb[0].mxu0
      %1430 = vmatprep.mubr.bf16.mxu0 %v1107
      %1431 = vmatmul.mubr.bf16.gmra.mrb[0].mxu0 %v1106
      %v1432 = vpop.f32.mrb[0].mxu0
      %v1433 = vadd.f32 %v1180, %v1432
      %v1434 = vpop.f32.mrb[0].mxu0
      %v1435 = vpop.f32.mrb[0].mxu0
      %v1436 = vadd.f32 %v1180, %v1435
      %v1437 = vpop.f32.mrb[0].mxu0
      %1438 = vmatprep.mubr.bf16.mxu0 %v1110
      %1439 = vmatmul.mubr.bf16.gmra.mrb[0].mxu0 %v1109
      %v1440 = vpop.f32.mrb[0].mxu0
      %v1441 = vadd.f32 %v1180, %v1440
      %v1442 = vpop.f32.mrb[0].mxu0
      %v1443 = vpop.f32.mrb[0].mxu0
      %v1444 = vadd.f32 %v1180, %v1443
      %v1445 = vpop.f32.mrb[0].mxu0
      %1446 = vmatprep.mubr.bf16.mxu0 %v1113
      %1447 = vmatmul.mubr.bf16.gmra.mrb[0].mxu0 %v1112
      %v1448 = vpop.f32.mrb[0].mxu0
      %v1449 = vadd.f32 %v1180, %v1448
      %v1450 = vpop.f32.mrb[0].mxu0
      %v1451 = vpop.f32.mrb[0].mxu0
      %v1452 = vadd.f32 %v1180, %v1451
      %v1453 = vpop.f32.mrb[0].mxu0
      %1454 = vmatprep.mubr.bf16.mxu0 %v1116
      %1455 = vmatmul.mubr.bf16.gmra.mrb[0].mxu0 %v1115
      %v1456 = vpop.f32.mrb[0].mxu0
      %v1457 = vadd.f32 %v1180, %v1456
      %v1458 = vpop.f32.mrb[0].mxu0
      %v1459 = vpop.f32.mrb[0].mxu0
      %v1460 = vadd.f32 %v1180, %v1459
      %v1461 = vpop.f32.mrb[0].mxu0
      %1462 = vmatprep.mubr.bf16.mxu0 %v1119
      %1463 = vmatmul.mubr.bf16.gmra.mrb[0].mxu0 %v1118
      %v1464 = vpop.f32.mrb[0].mxu0
      %v1465 = vadd.f32 %v1180, %v1464
      %v1466 = vpop.f32.mrb[0].mxu0
      %v1467 = vpop.f32.mrb[0].mxu0
      %v1468 = vadd.f32 %v1180, %v1467
      %v1469 = vpop.f32.mrb[0].mxu0
      %1470 = vmatprep.mubr.bf16.mxu0 %v1122
      %1471 = vmatmul.mubr.bf16.gmra.mrb[0].mxu0 %v1121
      %v1472 = vpop.f32.mrb[0].mxu0
      %v1473 = vadd.f32 %v1180, %v1472
      %v1474 = vpop.f32.mrb[0].mxu0
      %v1475 = vpop.f32.mrb[0].mxu0
      %v1476 = vadd.f32 %v1180, %v1475
      %v1477 = vpop.f32.mrb[0].mxu0
      %1478 = vmatprep.mubr.bf16.mxu0 %v1125
      %1479 = vmatmul.mubr.bf16.gmra.mrb[0].mxu0 %v1124
      %v1480 = vpop.f32.mrb[0].mxu0
      %v1481 = vadd.f32 %v1180, %v1480
      %v1482 = vpop.f32.mrb[0].mxu0
      %v1483 = vpop.f32.mrb[0].mxu0
      %v1484 = vadd.f32 %v1180, %v1483
      %v1485 = vpop.f32.mrb[0].mxu0
      %1486 = vdwg.mxu0
      %1487 = vmatprep.subr.bf16.mxu0 0
      %1488 = vmatpush1.bf16.msra.mxu0 %v1294
      %1489 = vmatprep.subr.bf16.mxu0 0
      %1490 = vmatpush1.bf16.msra.mxu0 %v1295
      %1491 = vmatprep.subr.bf16.mxu0 0
      %1492 = vmatpush1.bf16.msra.mxu0 %v1296
      %1493 = vmatprep.subr.bf16.mxu0 0
      %1494 = vmatpush1.bf16.msra.mxu0 %v1297
      %1495 = vmatprep.subr.bf16.mxu0 0
      %1496 = vmatpush1.bf16.msra.mxu0 %v1298
      %1497 = vmatprep.subr.bf16.mxu0 0
      %1498 = vmatpush1.bf16.msra.mxu0 %v1299
      %1499 = vmatprep.subr.bf16.mxu0 0
      %1500 = vmatpush1.bf16.msra.mxu0 %v1300
      %1501 = vmatprep.subr.bf16.mxu0 0
      %1502 = vmatpush1.bf16.msra.mxu0 %v1301
      %1503 = vmatprep.subr.bf16.mxu0 0
      %1504 = vmatpush1.bf16.msra.mxu0 0
      %1505 = vmatprep.subr.bf16.mxu0 0
      %1506 = vmatpush1.bf16.msra.mxu0 0
      %1507 = vmatprep.subr.bf16.mxu0 0
      %1508 = vmatpush1.bf16.msra.mxu0 0
      %1509 = vmatprep.subr.bf16.mxu0 0
      %1510 = vmatpush1.bf16.msra.mxu0 0
      %1511 = vmatprep.subr.bf16.mxu0 0
      %1512 = vmatpush1.bf16.msra.mxu0 0
      %1513 = vmatprep.subr.bf16.mxu0 0
      %1514 = vmatpush1.bf16.msra.mxu0 0
      %1515 = vmatprep.subr.bf16.mxu0 0
      %1516 = vmatpush1.bf16.msra.mxu0 0
      %1517 = vmatprep.subr.bf16.mxu0 0
      %1518 = vmatpush1.bf16.msra.mxu0 0
      %1519 = vmatprep.mubr.bf16.mxu0 0
      %1520 = vmatmul.mubr.bf16.gmra.mrb[0].mxu0 %v1081
      %v1521 = vpop.f32.mrb[0].mxu0
      %v1522 = vadd.f32 %v1361, %v1521
      %v1523 = vpop.f32.mrb[0].mxu0
      %v1524 = vpop.f32.mrb[0].mxu0
      %v1525 = vadd.f32 %v1364, %v1524
      %v1526 = vpop.f32.mrb[0].mxu0
      %1527 = vmatprep.mubr.bf16.mxu0 0
      %1528 = vmatmul.mubr.bf16.gmra.mrb[0].mxu0 %v1084
      %v1529 = vpop.f32.mrb[0].mxu0
      %v1530 = vadd.f32 %v1369, %v1529
      %v1531 = vpop.f32.mrb[0].mxu0
      %v1532 = vpop.f32.mrb[0].mxu0
      %v1533 = vadd.f32 %v1372, %v1532
      %v1534 = vpop.f32.mrb[0].mxu0
      %1535 = vmatprep.mubr.bf16.mxu0 0
      %1536 = vmatmul.mubr.bf16.gmra.mrb[0].mxu0 %v1087
      %v1537 = vpop.f32.mrb[0].mxu0
      %v1538 = vadd.f32 %v1377, %v1537
      %v1539 = vpop.f32.mrb[0].mxu0
      %v1540 = vpop.f32.mrb[0].mxu0
      %v1541 = vadd.f32 %v1380, %v1540
      %v1542 = vpop.f32.mrb[0].mxu0
      %1543 = vmatprep.mubr.bf16.mxu0 0
      %1544 = vmatmul.mubr.bf16.gmra.mrb[0].mxu0 %v1090
      %v1545 = vpop.f32.mrb[0].mxu0
      %v1546 = vadd.f32 %v1385, %v1545
      %v1547 = vpop.f32.mrb[0].mxu0
      %v1548 = vpop.f32.mrb[0].mxu0
      %v1549 = vadd.f32 %v1388, %v1548
      %v1550 = vpop.f32.mrb[0].mxu0
      %1551 = vmatprep.mubr.bf16.mxu0 0
      %1552 = vmatmul.mubr.bf16.gmra.mrb[0].mxu0 %v1093
      %v1553 = vpop.f32.mrb[0].mxu0
      %v1554 = vadd.f32 %v1393, %v1553
      %v1555 = vpop.f32.mrb[0].mxu0
      %v1556 = vpop.f32.mrb[0].mxu0
      %v1557 = vadd.f32 %v1396, %v1556
      %v1558 = vpop.f32.mrb[0].mxu0
      %1559 = vmatprep.mubr.bf16.mxu0 0
      %1560 = vmatmul.mubr.bf16.gmra.mrb[0].mxu0 %v1096
      %v1561 = vpop.f32.mrb[0].mxu0
      %v1562 = vadd.f32 %v1401, %v1561
      %v1563 = vpop.f32.mrb[0].mxu0
      %v1564 = vpop.f32.mrb[0].mxu0
      %v1565 = vadd.f32 %v1404, %v1564
      %v1566 = vpop.f32.mrb[0].mxu0
      %1567 = vmatprep.mubr.bf16.mxu0 0
      %1568 = vmatmul.mubr.bf16.gmra.mrb[0].mxu0 %v1099
      %v1569 = vpop.f32.mrb[0].mxu0
      %v1570 = vadd.f32 %v1409, %v1569
      %v1571 = vpop.f32.mrb[0].mxu0
      %v1572 = vpop.f32.mrb[0].mxu0
      %v1573 = vadd.f32 %v1412, %v1572
      %v1574 = vpop.f32.mrb[0].mxu0
      %1575 = vmatprep.mubr.bf16.mxu0 0
      %1576 = vmatmul.mubr.bf16.gmra.mrb[0].mxu0 %v1102
      %v1577 = vpop.f32.mrb[0].mxu0
      %v1578 = vadd.f32 %v1417, %v1577
      %v1579 = vpop.f32.mrb[0].mxu0
      %v1580 = vpop.f32.mrb[0].mxu0
      %v1581 = vadd.f32 %v1420, %v1580
      %v1582 = vpop.f32.mrb[0].mxu0
      %1583 = vmatprep.mubr.bf16.mxu0 0
      %1584 = vmatmul.mubr.bf16.gmra.mrb[0].mxu0 %v1105
      %v1585 = vpop.f32.mrb[0].mxu0
      %v1586 = vadd.f32 %v1425, %v1585
      %v1587 = vpop.f32.mrb[0].mxu0
      %v1588 = vpop.f32.mrb[0].mxu0
      %v1589 = vadd.f32 %v1428, %v1588
      %v1590 = vpop.f32.mrb[0].mxu0
      %1591 = vmatprep.mubr.bf16.mxu0 0
      %1592 = vmatmul.mubr.bf16.gmra.mrb[0].mxu0 %v1108
      %v1593 = vpop.f32.mrb[0].mxu0
      %v1594 = vadd.f32 %v1433, %v1593
      %v1595 = vpop.f32.mrb[0].mxu0
      %v1596 = vpop.f32.mrb[0].mxu0
      %v1597 = vadd.f32 %v1436, %v1596
      %v1598 = vpop.f32.mrb[0].mxu0
      %1599 = vmatprep.mubr.bf16.mxu0 0
      %1600 = vmatmul.mubr.bf16.gmra.mrb[0].mxu0 %v1111
      %v1601 = vpop.f32.mrb[0].mxu0
      %v1602 = vadd.f32 %v1441, %v1601
      %v1603 = vpop.f32.mrb[0].mxu0
      %v1604 = vpop.f32.mrb[0].mxu0
      %v1605 = vadd.f32 %v1444, %v1604
      %v1606 = vpop.f32.mrb[0].mxu0
      %1607 = vmatprep.mubr.bf16.mxu0 0
      %1608 = vmatmul.mubr.bf16.gmra.mrb[0].mxu0 %v1114
      %v1609 = vpop.f32.mrb[0].mxu0
      %v1610 = vadd.f32 %v1449, %v1609
      %v1611 = vpop.f32.mrb[0].mxu0
      %v1612 = vpop.f32.mrb[0].mxu0
      %v1613 = vadd.f32 %v1452, %v1612
      %v1614 = vpop.f32.mrb[0].mxu0
      %1615 = vmatprep.mubr.bf16.mxu0 0
      %1616 = vmatmul.mubr.bf16.gmra.mrb[0].mxu0 %v1117
      %v1617 = vpop.f32.mrb[0].mxu0
      %v1618 = vadd.f32 %v1457, %v1617
      %v1619 = vpop.f32.mrb[0].mxu0
      %v1620 = vpop.f32.mrb[0].mxu0
      %v1621 = vadd.f32 %v1460, %v1620
      %v1622 = vpop.f32.mrb[0].mxu0
      %1623 = vmatprep.mubr.bf16.mxu0 0
      %1624 = vmatmul.mubr.bf16.gmra.mrb[0].mxu0 %v1120
      %v1625 = vpop.f32.mrb[0].mxu0
      %v1626 = vadd.f32 %v1465, %v1625
      %v1627 = vpop.f32.mrb[0].mxu0
      %v1628 = vpop.f32.mrb[0].mxu0
      %v1629 = vadd.f32 %v1468, %v1628
      %v1630 = vpop.f32.mrb[0].mxu0
      %1631 = vmatprep.mubr.bf16.mxu0 0
      %1632 = vmatmul.mubr.bf16.gmra.mrb[0].mxu0 %v1123
      %v1633 = vpop.f32.mrb[0].mxu0
      %v1634 = vadd.f32 %v1473, %v1633
      %v1635 = vpop.f32.mrb[0].mxu0
      %v1636 = vpop.f32.mrb[0].mxu0
      %v1637 = vadd.f32 %v1476, %v1636
      %v1638 = vpop.f32.mrb[0].mxu0
      %1639 = vmatprep.mubr.bf16.mxu0 0
      %1640 = vmatmul.mubr.bf16.gmra.mrb[0].mxu0 %v1126
      %v1641 = vpop.f32.mrb[0].mxu0
      %v1642 = vadd.f32 %v1481, %v1641
      %v1643 = vpop.f32.mrb[0].mxu0
      %v1644 = vpop.f32.mrb[0].mxu0
      %v1645 = vadd.f32 %v1484, %v1644
      %v1646 = vpop.f32.mrb[0].mxu0
      %1647 = vdwg.mxu0
      %vm1648 = vcmp.gt.f32.partialorder %v1522, 0.0
      %vm1649 = vcmp.gt.f32.partialorder %v1525, 0.0
      %vm1650 = vcmp.gt.f32.partialorder %v1530, 0.0
      %vm1651 = vcmp.gt.f32.partialorder %v1533, 0.0
      %vm1652 = vcmp.gt.f32.partialorder %v1538, 0.0
      %vm1653 = vcmp.gt.f32.partialorder %v1541, 0.0
      %vm1654 = vcmp.gt.f32.partialorder %v1546, 0.0
      %vm1655 = vcmp.gt.f32.partialorder %v1549, 0.0
      %vm1656 = vcmp.gt.f32.partialorder %v1554, 0.0
      %vm1657 = vcmp.gt.f32.partialorder %v1557, 0.0
      %vm1658 = vcmp.gt.f32.partialorder %v1562, 0.0
      %vm1659 = vcmp.gt.f32.partialorder %v1565, 0.0
      %vm1660 = vcmp.gt.f32.partialorder %v1570, 0.0
      %vm1661 = vcmp.gt.f32.partialorder %v1573, 0.0
      %vm1662 = vcmp.gt.f32.partialorder %v1578, 0.0
      %vm1663 = vcmp.gt.f32.partialorder %v1581, 0.0
      %vm1664 = vcmp.gt.f32.partialorder %v1586, 0.0
      %vm1665 = vcmp.gt.f32.partialorder %v1589, 0.0
      %vm1666 = vcmp.gt.f32.partialorder %v1594, 0.0
      %vm1667 = vcmp.gt.f32.partialorder %v1597, 0.0
      %vm1668 = vcmp.gt.f32.partialorder %v1602, 0.0
      %vm1669 = vcmp.gt.f32.partialorder %v1605, 0.0
      %vm1670 = vcmp.gt.f32.partialorder %v1610, 0.0
      %vm1671 = vcmp.gt.f32.partialorder %v1613, 0.0
      %vm1672 = vcmp.gt.f32.partialorder %v1618, 0.0
      %vm1673 = vcmp.gt.f32.partialorder %v1621, 0.0
      %vm1674 = vcmp.gt.f32.partialorder %v1626, 0.0
      %vm1675 = vcmp.gt.f32.partialorder %v1629, 0.0
      %vm1676 = vcmp.gt.f32.partialorder %v1634, 0.0
      %vm1677 = vcmp.gt.f32.partialorder %v1637, 0.0
      %vm1678 = vcmp.gt.f32.partialorder %v1642, 0.0
      %vm1679 = vcmp.gt.f32.partialorder %v1645, 0.0
      %v1680 = vmul.f32 %v1522, 0.01
      %v1681 = vmul.f32 %v1525, 0.01
      %v1682 = vmul.f32 %v1530, 0.01
      %v1683 = vmul.f32 %v1533, 0.01
      %v1684 = vmul.f32 %v1538, 0.01
      %v1685 = vmul.f32 %v1541, 0.01
      %v1686 = vmul.f32 %v1546, 0.01
      %v1687 = vmul.f32 %v1549, 0.01
      %v1688 = vmul.f32 %v1554, 0.01
      %v1689 = vmul.f32 %v1557, 0.01
      %v1690 = vmul.f32 %v1562, 0.01
      %v1691 = vmul.f32 %v1565, 0.01
      %v1692 = vmul.f32 %v1570, 0.01
      %v1693 = vmul.f32 %v1573, 0.01
      %v1694 = vmul.f32 %v1578, 0.01
      %v1695 = vmul.f32 %v1581, 0.01
      %v1696 = vmul.f32 %v1586, 0.01
      %v1697 = vmul.f32 %v1589, 0.01
      %v1698 = vmul.f32 %v1594, 0.01
      %v1699 = vmul.f32 %v1597, 0.01
      %v1700 = vmul.f32 %v1602, 0.01
      %v1701 = vmul.f32 %v1605, 0.01
      %v1702 = vmul.f32 %v1610, 0.01
      %v1703 = vmul.f32 %v1613, 0.01
      %v1704 = vmul.f32 %v1618, 0.01
      %v1705 = vmul.f32 %v1621, 0.01
      %v1706 = vmul.f32 %v1626, 0.01
      %v1707 = vmul.f32 %v1629, 0.01
      %v1708 = vmul.f32 %v1634, 0.01
      %v1709 = vmul.f32 %v1637, 0.01
      %v1710 = vmul.f32 %v1642, 0.01
      %v1711 = vmul.f32 %v1645, 0.01
      %v1712 = vsel %vm1648, %v1522, %v1680
      %v1713 = vsel %vm1649, %v1525, %v1681
      %v1714 = vsel %vm1650, %v1530, %v1682
      %v1715 = vsel %vm1651, %v1533, %v1683
      %v1716 = vsel %vm1652, %v1538, %v1684
      %v1717 = vsel %vm1653, %v1541, %v1685
      %v1718 = vsel %vm1654, %v1546, %v1686
      %v1719 = vsel %vm1655, %v1549, %v1687
      %v1720 = vsel %vm1656, %v1554, %v1688
      %v1721 = vsel %vm1657, %v1557, %v1689
      %v1722 = vsel %vm1658, %v1562, %v1690
      %v1723 = vsel %vm1659, %v1565, %v1691
      %v1724 = vsel %vm1660, %v1570, %v1692
      %v1725 = vsel %vm1661, %v1573, %v1693
      %v1726 = vsel %vm1662, %v1578, %v1694
      %v1727 = vsel %vm1663, %v1581, %v1695
      %v1728 = vsel %vm1664, %v1586, %v1696
      %v1729 = vsel %vm1665, %v1589, %v1697
      %v1730 = vsel %vm1666, %v1594, %v1698
      %v1731 = vsel %vm1667, %v1597, %v1699
      %v1732 = vsel %vm1668, %v1602, %v1700
      %v1733 = vsel %vm1669, %v1605, %v1701
      %v1734 = vsel %vm1670, %v1610, %v1702
      %v1735 = vsel %vm1671, %v1613, %v1703
      %v1736 = vsel %vm1672, %v1618, %v1704
      %v1737 = vsel %vm1673, %v1621, %v1705
      %v1738 = vsel %vm1674, %v1626, %v1706
      %v1739 = vsel %vm1675, %v1629, %v1707
      %v1740 = vsel %vm1676, %v1634, %v1708
      %v1741 = vsel %vm1677, %v1637, %v1709
      %v1742 = vsel %vm1678, %v1642, %v1710
      %v1743 = vsel %vm1679, %v1645, %v1711
      %v1744 = vpack.c.bf16 %v1713, %v1712
      %v1745 = vpack.c.bf16 %v1715, %v1714
      %v1746 = vpack.c.bf16 %v1717, %v1716
      %v1747 = vpack.c.bf16 %v1719, %v1718
      %v1748 = vpack.c.bf16 %v1721, %v1720
      %v1749 = vpack.c.bf16 %v1723, %v1722
      %v1750 = vpack.c.bf16 %v1725, %v1724
      %v1751 = vpack.c.bf16 %v1727, %v1726
      %v1752 = vpack.c.bf16 %v1729, %v1728
      %v1753 = vpack.c.bf16 %v1731, %v1730
      %v1754 = vpack.c.bf16 %v1733, %v1732
      %v1755 = vpack.c.bf16 %v1735, %v1734
      %v1756 = vpack.c.bf16 %v1737, %v1736
      %v1757 = vpack.c.bf16 %v1739, %v1738
      %v1758 = vpack.c.bf16 %v1741, %v1740
      %v1759 = vpack.c.bf16 %v1743, %v1742
      %v1760 = vld [vmem:[%s5] sm:$0xf]
      %v1761 = vld [vmem:[%s5 + $0x4] sm:$0xf]
      %v1762 = vld [vmem:[%s5 + $0x8] sm:$0xf]
      %v1763 = vld [vmem:[%s5 + $0xc] sm:$0xf]
      %v1764 = vld [vmem:[%s5 + $0x10] sm:$0xf]
      %v1765 = vld [vmem:[%s5 + $0x14] sm:$0xf]
      %v1766 = vld [vmem:[%s5 + $0x18] sm:$0xf]
      %v1767 = vld [vmem:[%s5 + $0x1c] sm:$0xf]
      %v1768 = vld [vmem:[%s5 + $0x20] sm:$0xf]
      %v1769 = vld [vmem:[%s5 + $0x24] sm:$0xf]
      %v1770 = vld [vmem:[%s5 + $0x28] sm:$0xf]
      %v1771 = vld [vmem:[%s5 + $0x2c] sm:$0xf]
      %v1772 = vld [vmem:[%s5 + $0x30] sm:$0xf]
      %v1773 = vld [vmem:[%s5 + $0x34] sm:$0xf]
      %v1774 = vld [vmem:[%s5 + $0x38] sm:$0xf]
      %v1775 = vld [vmem:[%s5 + $0x3c] sm:$0xf]
      %v1776 = vld [vmem:[%s6] sm:$0x1]
      %v1778 = vlaneseq
      %v1779 = vshrl.u32 %v1778, 7
      %v1780 = vsub.s32 0, %v1779
      %v1781 = vrot.slane %v1776, %v1780
      %v1799 = vunpack.c.l.b16 %v1760
      %v1800 = vunpack.c.l.b16 %v1761
      %v1801 = vunpack.c.l.b16 %v1762
      %v1802 = vunpack.c.l.b16 %v1763
      %v1803 = vunpack.c.l.b16 %v1764
      %v1804 = vunpack.c.l.b16 %v1765
      %v1805 = vunpack.c.l.b16 %v1766
      %v1806 = vunpack.c.l.b16 %v1767
      %v1807 = vunpack.c.l.b16 %v1768
      %v1808 = vunpack.c.l.b16 %v1769
      %v1809 = vunpack.c.l.b16 %v1770
      %v1810 = vunpack.c.l.b16 %v1771
      %v1811 = vunpack.c.l.b16 %v1772
      %v1812 = vunpack.c.l.b16 %v1773
      %v1813 = vunpack.c.l.b16 %v1774
      %v1814 = vunpack.c.l.b16 %v1775
      %v1815 = vpack.c.b16 %v1800, %v1799
      %v1816 = vpack.c.b16 %v1802, %v1801
      %v1817 = vpack.c.b16 %v1804, %v1803
      %v1818 = vpack.c.b16 %v1806, %v1805
      %v1819 = vpack.c.b16 %v1808, %v1807
      %v1820 = vpack.c.b16 %v1810, %v1809
      %v1821 = vpack.c.b16 %v1812, %v1811
      %v1822 = vpack.c.b16 %v1814, %v1813
      %1831 = vmatprep.subr.bf16.mxu0 0
      %1832 = vmatpush1.bf16.msra.mxu0 %v1815
      %1833 = vmatprep.subr.bf16.mxu0 0
      %1834 = vmatpush1.bf16.msra.mxu0 %v1816
      %1835 = vmatprep.subr.bf16.mxu0 0
      %1836 = vmatpush1.bf16.msra.mxu0 %v1817
      %1837 = vmatprep.subr.bf16.mxu0 0
      %1838 = vmatpush1.bf16.msra.mxu0 %v1818
      %1839 = vmatprep.subr.bf16.mxu0 0
      %1840 = vmatpush1.bf16.msra.mxu0 %v1819
      %1841 = vmatprep.subr.bf16.mxu0 0
      %1842 = vmatpush1.bf16.msra.mxu0 %v1820
      %1843 = vmatprep.subr.bf16.mxu0 0
      %1844 = vmatpush1.bf16.msra.mxu0 %v1821
      %1845 = vmatprep.subr.bf16.mxu0 0
      %1846 = vmatpush1.bf16.msra.mxu0 %v1822
      %1847 = vmatprep.subr.bf16.mxu0 0
      %1848 = vmatpush1.bf16.msra.mxu0 0
      %1849 = vmatprep.subr.bf16.mxu0 0
      %1850 = vmatpush1.bf16.msra.mxu0 0
      %1851 = vmatprep.subr.bf16.mxu0 0
      %1852 = vmatpush1.bf16.msra.mxu0 0
      %1853 = vmatprep.subr.bf16.mxu0 0
      %1854 = vmatpush1.bf16.msra.mxu0 0
      %1855 = vmatprep.subr.bf16.mxu0 0
      %1856 = vmatpush1.bf16.msra.mxu0 0
      %1857 = vmatprep.subr.bf16.mxu0 0
      %1858 = vmatpush1.bf16.msra.mxu0 0
      %1859 = vmatprep.subr.bf16.mxu0 0
      %1860 = vmatpush1.bf16.msra.mxu0 0
      %1861 = vmatprep.subr.bf16.mxu0 0
      %1862 = vmatpush1.bf16.msra.mxu0 0
      %1863 = vmatprep.mubr.bf16.mxu0 0
      %1864 = vmatmul.mubr.bf16.gmra.mrb[0].mxu0 %v1744
      %v1865 = vpop.f32.mrb[0].mxu0
      %v1866 = vadd.f32 %v1781, %v1865
      %v1867 = vpop.f32.mrb[0].mxu0
      %v1868 = vpop.f32.mrb[0].mxu0
      %v1869 = vadd.f32 %v1781, %v1868
      %v1870 = vpop.f32.mrb[0].mxu0
      %1871 = vmatprep.mubr.bf16.mxu0 0
      %1872 = vmatmul.mubr.bf16.gmra.mrb[0].mxu0 %v1745
      %v1873 = vpop.f32.mrb[0].mxu0
      %v1874 = vadd.f32 %v1781, %v1873
      %v1875 = vpop.f32.mrb[0].mxu0
      %v1876 = vpop.f32.mrb[0].mxu0
      %v1877 = vadd.f32 %v1781, %v1876
      %v1878 = vpop.f32.mrb[0].mxu0
      %1879 = vmatprep.mubr.bf16.mxu0 0
      %1880 = vmatmul.mubr.bf16.gmra.mrb[0].mxu0 %v1746
      %v1881 = vpop.f32.mrb[0].mxu0
      %v1882 = vadd.f32 %v1781, %v1881
      %v1883 = vpop.f32.mrb[0].mxu0
      %v1884 = vpop.f32.mrb[0].mxu0
      %v1885 = vadd.f32 %v1781, %v1884
      %v1886 = vpop.f32.mrb[0].mxu0
      %1887 = vmatprep.mubr.bf16.mxu0 0
      %1888 = vmatmul.mubr.bf16.gmra.mrb[0].mxu0 %v1747
      %v1889 = vpop.f32.mrb[0].mxu0
      %v1890 = vadd.f32 %v1781, %v1889
      %v1891 = vpop.f32.mrb[0].mxu0
      %v1892 = vpop.f32.mrb[0].mxu0
      %v1893 = vadd.f32 %v1781, %v1892
      %v1894 = vpop.f32.mrb[0].mxu0
      %1895 = vmatprep.mubr.bf16.mxu0 0
      %1896 = vmatmul.mubr.bf16.gmra.mrb[0].mxu0 %v1748
      %v1897 = vpop.f32.mrb[0].mxu0
      %v1898 = vadd.f32 %v1781, %v1897
      %v1899 = vpop.f32.mrb[0].mxu0
      %v1900 = vpop.f32.mrb[0].mxu0
      %v1901 = vadd.f32 %v1781, %v1900
      %v1902 = vpop.f32.mrb[0].mxu0
      %1903 = vmatprep.mubr.bf16.mxu0 0
      %1904 = vmatmul.mubr.bf16.gmra.mrb[0].mxu0 %v1749
      %v1905 = vpop.f32.mrb[0].mxu0
      %v1906 = vadd.f32 %v1781, %v1905
      %v1907 = vpop.f32.mrb[0].mxu0
      %v1908 = vpop.f32.mrb[0].mxu0
      %v1909 = vadd.f32 %v1781, %v1908
      %v1910 = vpop.f32.mrb[0].mxu0
      %1911 = vmatprep.mubr.bf16.mxu0 0
      %1912 = vmatmul.mubr.bf16.gmra.mrb[0].mxu0 %v1750
      %v1913 = vpop.f32.mrb[0].mxu0
      %v1914 = vadd.f32 %v1781, %v1913
      %v1915 = vpop.f32.mrb[0].mxu0
      %v1916 = vpop.f32.mrb[0].mxu0
      %v1917 = vadd.f32 %v1781, %v1916
      %v1918 = vpop.f32.mrb[0].mxu0
      %1919 = vmatprep.mubr.bf16.mxu0 0
      %1920 = vmatmul.mubr.bf16.gmra.mrb[0].mxu0 %v1751
      %v1921 = vpop.f32.mrb[0].mxu0
      %v1922 = vadd.f32 %v1781, %v1921
      %v1923 = vpop.f32.mrb[0].mxu0
      %v1924 = vpop.f32.mrb[0].mxu0
      %v1925 = vadd.f32 %v1781, %v1924
      %v1926 = vpop.f32.mrb[0].mxu0
      %1927 = vmatprep.mubr.bf16.mxu0 0
      %1928 = vmatmul.mubr.bf16.gmra.mrb[0].mxu0 %v1752
      %v1929 = vpop.f32.mrb[0].mxu0
      %v1930 = vadd.f32 %v1781, %v1929
      %v1931 = vpop.f32.mrb[0].mxu0
      %v1932 = vpop.f32.mrb[0].mxu0
      %v1933 = vadd.f32 %v1781, %v1932
      %v1934 = vpop.f32.mrb[0].mxu0
      %1935 = vmatprep.mubr.bf16.mxu0 0
      %1936 = vmatmul.mubr.bf16.gmra.mrb[0].mxu0 %v1753
      %v1937 = vpop.f32.mrb[0].mxu0
      %v1938 = vadd.f32 %v1781, %v1937
      %v1939 = vpop.f32.mrb[0].mxu0
      %v1940 = vpop.f32.mrb[0].mxu0
      %v1941 = vadd.f32 %v1781, %v1940
      %v1942 = vpop.f32.mrb[0].mxu0
      %1943 = vmatprep.mubr.bf16.mxu0 0
      %1944 = vmatmul.mubr.bf16.gmra.mrb[0].mxu0 %v1754
      %v1945 = vpop.f32.mrb[0].mxu0
      %v1946 = vadd.f32 %v1781, %v1945
      %v1947 = vpop.f32.mrb[0].mxu0
      %v1948 = vpop.f32.mrb[0].mxu0
      %v1949 = vadd.f32 %v1781, %v1948
      %v1950 = vpop.f32.mrb[0].mxu0
      %1951 = vmatprep.mubr.bf16.mxu0 0
      %1952 = vmatmul.mubr.bf16.gmra.mrb[0].mxu0 %v1755
      %v1953 = vpop.f32.mrb[0].mxu0
      %v1954 = vadd.f32 %v1781, %v1953
      %v1955 = vpop.f32.mrb[0].mxu0
      %v1956 = vpop.f32.mrb[0].mxu0
      %v1957 = vadd.f32 %v1781, %v1956
      %v1958 = vpop.f32.mrb[0].mxu0
      %1959 = vmatprep.mubr.bf16.mxu0 0
      %1960 = vmatmul.mubr.bf16.gmra.mrb[0].mxu0 %v1756
      %v1961 = vpop.f32.mrb[0].mxu0
      %v1962 = vadd.f32 %v1781, %v1961
      %v1963 = vpop.f32.mrb[0].mxu0
      %v1964 = vpop.f32.mrb[0].mxu0
      %v1965 = vadd.f32 %v1781, %v1964
      %v1966 = vpop.f32.mrb[0].mxu0
      %1967 = vmatprep.mubr.bf16.mxu0 0
      %1968 = vmatmul.mubr.bf16.gmra.mrb[0].mxu0 %v1757
      %v1969 = vpop.f32.mrb[0].mxu0
      %v1970 = vadd.f32 %v1781, %v1969
      %v1971 = vpop.f32.mrb[0].mxu0
      %v1972 = vpop.f32.mrb[0].mxu0
      %v1973 = vadd.f32 %v1781, %v1972
      %v1974 = vpop.f32.mrb[0].mxu0
      %1975 = vmatprep.mubr.bf16.mxu0 0
      %1976 = vmatmul.mubr.bf16.gmra.mrb[0].mxu0 %v1758
      %v1977 = vpop.f32.mrb[0].mxu0
      %v1978 = vadd.f32 %v1781, %v1977
      %v1979 = vpop.f32.mrb[0].mxu0
      %v1980 = vpop.f32.mrb[0].mxu0
      %v1981 = vadd.f32 %v1781, %v1980
      %v1982 = vpop.f32.mrb[0].mxu0
      %1983 = vmatprep.mubr.bf16.mxu0 0
      %1984 = vmatmul.mubr.bf16.gmra.mrb[0].mxu0 %v1759
      %v1985 = vpop.f32.mrb[0].mxu0
      %v1986 = vadd.f32 %v1781, %v1985
      %v1987 = vpop.f32.mrb[0].mxu0
      %v1988 = vpop.f32.mrb[0].mxu0
      %v1989 = vadd.f32 %v1781, %v1988
      %v1990 = vpop.f32.mrb[0].mxu0
      %1991 = vdwg.mxu0
      %v1992 = vpack.c.bf16 %v1869, %v1866
      %v1993 = vpack.c.bf16 %v1877, %v1874
      %v1994 = vpack.c.bf16 %v1885, %v1882
      %v1995 = vpack.c.bf16 %v1893, %v1890
      %v1996 = vpack.c.bf16 %v1901, %v1898
      %v1997 = vpack.c.bf16 %v1909, %v1906
      %v1998 = vpack.c.bf16 %v1917, %v1914
      %v1999 = vpack.c.bf16 %v1925, %v1922
      %v2000 = vpack.c.bf16 %v1933, %v1930
      %v2001 = vpack.c.bf16 %v1941, %v1938
      %v2002 = vpack.c.bf16 %v1949, %v1946
      %v2003 = vpack.c.bf16 %v1957, %v1954
      %v2004 = vpack.c.bf16 %v1965, %v1962
      %v2005 = vpack.c.bf16 %v1973, %v1970
      %v2006 = vpack.c.bf16 %v1981, %v1978
      %v2007 = vpack.c.bf16 %v1989, %v1986
      %v2024 = vunpack.c.l.b16 %v1992
      %v2025 = vunpack.c.h.b16 %v1992
      %v2026 = vunpack.c.l.b16 %v1993
      %v2027 = vunpack.c.h.b16 %v1993
      %v2028 = vunpack.c.l.b16 %v1994
      %v2029 = vunpack.c.h.b16 %v1994
      %v2030 = vunpack.c.l.b16 %v1995
      %v2031 = vunpack.c.h.b16 %v1995
      %v2032 = vunpack.c.l.b16 %v1996
      %v2033 = vunpack.c.h.b16 %v1996
      %v2034 = vunpack.c.l.b16 %v1997
      %v2035 = vunpack.c.h.b16 %v1997
      %v2036 = vunpack.c.l.b16 %v1998
      %v2037 = vunpack.c.h.b16 %v1998
      %v2038 = vunpack.c.l.b16 %v1999
      %v2039 = vunpack.c.h.b16 %v1999
      %v2040 = vunpack.c.l.b16 %v2000
      %v2041 = vunpack.c.h.b16 %v2000
      %v2042 = vunpack.c.l.b16 %v2001
      %v2043 = vunpack.c.h.b16 %v2001
      %v2044 = vunpack.c.l.b16 %v2002
      %v2045 = vunpack.c.h.b16 %v2002
      %v2046 = vunpack.c.l.b16 %v2003
      %v2047 = vunpack.c.h.b16 %v2003
      %v2048 = vunpack.c.l.b16 %v2004
      %v2049 = vunpack.c.h.b16 %v2004
      %v2050 = vunpack.c.l.b16 %v2005
      %v2051 = vunpack.c.h.b16 %v2005
      %v2052 = vunpack.c.l.b16 %v2006
      %v2053 = vunpack.c.h.b16 %v2006
      %v2054 = vunpack.c.l.b16 %v2007
      %v2055 = vunpack.c.h.b16 %v2007
      %v2056 = vpack.c.b16 %v2024, %v2024
      %v2057 = vpack.c.b16 %v2025, %v2025
      %v2058 = vpack.c.b16 %v2026, %v2026
      %v2059 = vpack.c.b16 %v2027, %v2027
      %v2060 = vpack.c.b16 %v2028, %v2028
      %v2061 = vpack.c.b16 %v2029, %v2029
      %v2062 = vpack.c.b16 %v2030, %v2030
      %v2063 = vpack.c.b16 %v2031, %v2031
      %v2064 = vpack.c.b16 %v2032, %v2032
      %v2065 = vpack.c.b16 %v2033, %v2033
      %v2066 = vpack.c.b16 %v2034, %v2034
      %v2067 = vpack.c.b16 %v2035, %v2035
      %v2068 = vpack.c.b16 %v2036, %v2036
      %v2069 = vpack.c.b16 %v2037, %v2037
      %v2070 = vpack.c.b16 %v2038, %v2038
      %v2071 = vpack.c.b16 %v2039, %v2039
      %v2072 = vpack.c.b16 %v2040, %v2040
      %v2073 = vpack.c.b16 %v2041, %v2041
      %v2074 = vpack.c.b16 %v2042, %v2042
      %v2075 = vpack.c.b16 %v2043, %v2043
      %v2076 = vpack.c.b16 %v2044, %v2044
      %v2077 = vpack.c.b16 %v2045, %v2045
      %v2078 = vpack.c.b16 %v2046, %v2046
      %v2079 = vpack.c.b16 %v2047, %v2047
      %v2080 = vpack.c.b16 %v2048, %v2048
      %v2081 = vpack.c.b16 %v2049, %v2049
      %v2082 = vpack.c.b16 %v2050, %v2050
      %v2083 = vpack.c.b16 %v2051, %v2051
      %v2084 = vpack.c.b16 %v2052, %v2052
      %v2085 = vpack.c.b16 %v2053, %v2053
      %v2086 = vpack.c.b16 %v2054, %v2054
      %v2087 = vpack.c.b16 %v2055, %v2055
      %2120 = vst [vmem:[%s280] sm:$0xf] %v2056
      %2121 = vst [vmem:[%s280 + $0x4] sm:$0xf] %v2057
      %2122 = vst [vmem:[%s280 + $0x8] sm:$0xf] %v2058
      %2123 = vst [vmem:[%s280 + $0xc] sm:$0xf] %v2059
      %2124 = vst [vmem:[%s280 + $0x10] sm:$0xf] %v2060
      %2125 = vst [vmem:[%s280 + $0x14] sm:$0xf] %v2061
      %2126 = vst [vmem:[%s280 + $0x18] sm:$0xf] %v2062
      %2127 = vst [vmem:[%s280 + $0x1c] sm:$0xf] %v2063
      %2128 = vst [vmem:[%s280 + $0x20] sm:$0xf] %v2064
      %2129 = vst [vmem:[%s280 + $0x24] sm:$0xf] %v2065
      %2130 = vst [vmem:[%s280 + $0x28] sm:$0xf] %v2066
      %2131 = vst [vmem:[%s280 + $0x2c] sm:$0xf] %v2067
      %2132 = vst [vmem:[%s280 + $0x30] sm:$0xf] %v2068
      %2133 = vst [vmem:[%s280 + $0x34] sm:$0xf] %v2069
      %2134 = vst [vmem:[%s280 + $0x38] sm:$0xf] %v2070
      %2135 = vst [vmem:[%s280 + $0x3c] sm:$0xf] %v2071
      %2136 = vst [vmem:[%s280 + $0x40] sm:$0xf] %v2072
      %2137 = vst [vmem:[%s280 + $0x44] sm:$0xf] %v2073
      %2138 = vst [vmem:[%s280 + $0x48] sm:$0xf] %v2074
      %2139 = vst [vmem:[%s280 + $0x4c] sm:$0xf] %v2075
      %2140 = vst [vmem:[%s280 + $0x50] sm:$0xf] %v2076
      %2141 = vst [vmem:[%s280 + $0x54] sm:$0xf] %v2077
      %2142 = vst [vmem:[%s280 + $0x58] sm:$0xf] %v2078
      %2143 = vst [vmem:[%s280 + $0x5c] sm:$0xf] %v2079
      %2144 = vst [vmem:[%s280 + $0x60] sm:$0xf] %v2080
      %2145 = vst [vmem:[%s280 + $0x64] sm:$0xf] %v2081
      %2146 = vst [vmem:[%s280 + $0x68] sm:$0xf] %v2082
      %2147 = vst [vmem:[%s280 + $0x6c] sm:$0xf] %v2083
      %2148 = vst [vmem:[%s280 + $0x70] sm:$0xf] %v2084
      %2149 = vst [vmem:[%s280 + $0x74] sm:$0xf] %v2085
      %2150 = vst [vmem:[%s280 + $0x78] sm:$0xf] %v2086
      %2151 = vst [vmem:[%s280 + $0x7c] sm:$0xf] %v2087
      %s2152 = smul.u32 32, %s18
      %p2153 = scmp.lt.s32.totalorder %s2152, 63
      %s2154 = scalar_select %p2153, %s2152, 63
      %s2155 = smul.addr %s2154, 4
      %s2156 = scalar_lea.vmem %s7, %s2155
      // Predicated region
      $region49: #{bottom_model.1} parent=47 // pred_check
        %p2157 = pneg %p188
      $region50: #{bottom_model.1} parent=47 // pred_check_branch
        %2159 = sbr.rel (%p2157) target = $region52
      $region51: #{bottom_model.1} parent=47 // pred_region
        %s2160 = smul.u32 32, %s18
      $region52: #{bottom_model.1} parent=47 // pred_fallthru
        _
    $region48: #{bottom_model.1} parent=5 // pred_fallthru
      _
    %p2161 = scmp.le.s32.totalorder 2, %s13
    // Predicated region
    $region53: #{bottom_model.1} parent=5 // pred_check
      %p2162 = pneg %p2161
    $region54: #{bottom_model.1} parent=5 // pred_check_branch
      %2164 = sbr.rel (%p2162) target = $region56
    $region55: #{bottom_model.1} parent=5 // pred_region
      %s2165 = ssub.s32 %s13, 2
      // Predicated region
      $region57: #{bottom_model.1} parent=55 // pred_check
        %p2166 = pneg %p194
      $region58: #{bottom_model.1} parent=55 // pred_check_branch
        %2168 = sbr.rel (%p2166) target = $region60
      $region59: #{bottom_model.1} parent=55 // pred_region
        %s2169 = smul.u32 32, %s19
        %p2170 = scmp.lt.s32.totalorder %s2169, 63
        %s2171 = scalar_select %p2170, %s2169, 63
        %s2172 = smul.addr %s2171, 4
        %s2173 = scalar_lea.vmem %s7, %s2172
      $region60: #{bottom_model.1} parent=55 // pred_fallthru
        _
    $region56: #{bottom_model.1} parent=5 // pred_fallthru
      _
  $region6: #{bottom_model.1} parent=0 // loop_footer
    %s17 = sadd.s32 1, %s13
  $region7: #{bottom_model.1} parent=0 // loop_footer_branch
    %12 = sbr.rel target = $region3
  $region8: #{bottom_model.1} parent=0 // loop_exit
    _

</llo_original>
